<compile_context>
chip_gen: v7x
topology: tpu7x:2x2x1
jax: 0.10.0
libtpu: 0.0.40
codegen_flags: <defaults>
</compile_context>

<pallas_src>
import jax
import jax.numpy as jnp
from jax import lax
from jax.experimental import pallas as pl
from jax.experimental.pallas import tpu as pltpu


# ----------------------------------------------------------------------------
# Pallas kernel: Bt batch elements per grid step.
# ----------------------------------------------------------------------------
def _apply_single_attention_kernel(
    v_ref,      # (Bt, No, Dv)  f32
    q_ref,      # (Bt, Nq, Dq)  f32
    a_ref,      # (Bt, Nq, No)  f32  -- atten with the size-1 dim squeezed
    wv_ref,     # (Dv, M)       bf16 -- lin_v weight, transposed (in, out)
    wq_ref,     # (Dq, M)       bf16
    wa_ref,     # (M, M)        bf16 -- lin_atten weight, transposed
    b_ref,      # (3, M)        f32  -- rows: bv, bq, ba
    o_ref,      # (Bt, M)       f32  -- lane-dense output slab
):
    Bt, No, Dv = v_ref.shape
    _, Nq, Dq = q_ref.shape
    M = wv_ref.shape[1]

    b_all = b_ref[...]                                   # (3, M) f32
    bv, bq, ba = b_all[0:1, :], b_all[1:2, :], b_all[2:3, :]

    # lin_v: relu(v @ Wv^T + bv) fused over the batch tile -> one (Bt*No, Dv)x(Dv, M) MXU pass.
    # bf16 cast happens here (not in the wrapper) to avoid an extra HBM round trip.
    v2 = v_ref[...].reshape(Bt * No, Dv).astype(jnp.bfloat16)
    v_p = jnp.maximum(
        jnp.dot(v2, wv_ref[...], preferred_element_type=jnp.float32) + bv, 0.0)
    v_p = v_p.reshape(Bt, No, M).astype(jnp.bfloat16)    # drop the f32 copy immediately

    wq = wq_ref[...]                                     # hoisted out of the chunk loop

    # h[b,d] = sum_j (sum_i atten[b,j,i] * v_p[b,i,d]) * q_p[b,j,d]
    # Computed in Nq-chunks (unrolled fori_loop) so the f32 intermediates never exceed
    # (Bt, C, M), bounding vreg pressure as Bt grows.
    C = 8 if (Nq >= 8 and Nq % 8 == 0) else Nq
    n_chunks = Nq // C

    def body(j, h):
        q0 = pl.multiple_of(j * C, C)                    # aligned sublane start
        q_c = q_ref[:, pl.ds(q0, C), :].reshape(Bt * C, Dq).astype(jnp.bfloat16)
        q_p = jnp.maximum(
            jnp.dot(q_c, wq, preferred_element_type=jnp.float32) + bq, 0.0
        ).reshape(Bt, C, M)                              # (Bt, C, M) f32
        a_c = a_ref[:, pl.ds(q0, C), :].astype(jnp.bfloat16)        # (Bt, C, No) bf16
        tmp = jnp.einsum("bqo,bod->bqd", a_c, v_p,
                         preferred_element_type=jnp.float32)        # (Bt, C, M) f32
        return h + jnp.sum(tmp * q_p, axis=1)            # VPU mul + sublane reduce

    h = lax.fori_loop(0, n_chunks, body,
                      jnp.zeros((Bt, M), jnp.float32), unroll=True)

    # lin_atten (no activation), batched over the Bt rows: h @ Wa^T + ba.
    # (Keeping h in f32 for this pass is an accuracy option; bf16 chosen for MXU rate.)
    out = jnp.dot(h.astype(jnp.bfloat16), wa_ref[...],
                  preferred_element_type=jnp.float32) + ba
    o_ref[...] = out.astype(o_ref.dtype)


# ----------------------------------------------------------------------------
# Helpers: batch-tile choice and VMEM budget
# ----------------------------------------------------------------------------
def _choose_batch_tile(B, cap, core_split):
    """Largest Bt <= cap dividing B (Bt % 8 == 0 unless grid == 1); prefer a grid that is a
    multiple of core_split (set core_split=2 on v7x so both TensorCores get work)."""
    cap = max(1, min(cap, B))
    cands = [d for d in range(cap, 0, -1)
             if B % d == 0 and (d % 8 == 0 or B // d == 1)]
    for d in cands:
        if (B // d) % core_split == 0:
            return d, B
    if cands:
        return cands[0], B
    # Fallback for awkward B: pad the batch up to a multiple of an 8-aligned tile.
    bt = max(8, (min(cap, 64) // 8) * 8)
    return bt, -(-B // bt) * bt


def _block_bytes(shape, dtype):
    s = list(shape)
    s[-1] = -(-s[-1] // 128) * 128
    if len(s) >= 2:
        s[-2] = -(-s[-2] // 8) * 8
    n = 1
    for d in s:
        n *= d
    return n * jnp.dtype(dtype).itemsize


# ----------------------------------------------------------------------------
# Wrapper
# ----------------------------------------------------------------------------
def apply_single_attention(v, q, atten, kp, *, block_b=64, core_split=1):
    B, No, Dv = v.shape
    _, Nq, Dq = q.shape
    M = kp["wv_t"].shape[1]

    a_sq = atten.reshape(B, Nq, No)          # squeeze the size-1 dim (free metadata reshape)

    Bt, Bp = _choose_batch_tile(B, block_b, core_split)
    if Bp != B:                               # rare fallback only (no pad for divisor-friendly B)
        pad = Bp - B
        v = jnp.pad(v, ((0, pad), (0, 0), (0, 0)))
        q = jnp.pad(q, ((0, pad), (0, 0), (0, 0)))
        a_sq = jnp.pad(a_sq, ((0, pad), (0, 0), (0, 0)))
    nb = Bp // Bt

    # VMEM budget: double-buffered sum of all blocks + headroom, clamped for v5e/v7x.
    blocks = [((Bt, No, Dv), jnp.float32), ((Bt, Nq, Dq), jnp.float32),
              ((Bt, Nq, No), jnp.float32), ((Dv, M), jnp.bfloat16),
              ((Dq, M), jnp.bfloat16), ((M, M), jnp.bfloat16),
              ((3, M), jnp.float32), ((Bt, M), jnp.float32)]
    need = 2 * sum(_block_bytes(s, d) for s, d in blocks)
    vmem_limit = int(min(max(need + (4 << 20), 32 << 20), 64 << 20))

    batch3 = lambda shp: pl.BlockSpec(shp, lambda b: (b, 0, 0))
    const2 = lambda shp: pl.BlockSpec(shp, lambda b: (0, 0))

    out2 = pl.pallas_call(
        _apply_single_attention_kernel,
        out_shape=jax.ShapeDtypeStruct((Bp, M), jnp.float32),
        grid_spec=pltpu.PrefetchScalarGridSpec(
            num_scalar_prefetch=0,
            grid=(nb,),
            in_specs=[
                batch3((Bt, No, Dv)),   # v   (f32, cast in-kernel)
                batch3((Bt, Nq, Dq)),   # q
                batch3((Bt, Nq, No)),   # atten (squeezed)
                const2((Dv, M)),        # wv^T  bf16
                const2((Dq, M)),        # wq^T  bf16
                const2((M, M)),         # wa^T  bf16
                const2((3, M)),         # [bv; bq; ba] f32
            ],
            out_specs=pl.BlockSpec((Bt, M), lambda b: (b, 0)),
        ),
        compiler_params=pltpu.CompilerParams(
            dimension_semantics=("parallel",),
            vmem_limit_bytes=vmem_limit,
        ),
    )(v, q, a_sq, kp["wv_t"], kp["wq_t"], kp["wa_t"], kp["b_all"])

    return out2[:B, None, :]                 # (B, 1, M), matching lin_atten(h_.unsqueeze(1))


# ----------------------------------------------------------------------------
# One-time parameter preparation (hoisted out of the per-call path)
# ----------------------------------------------------------------------------
def prepare_kernel_params(params):
    """Transpose to (in, out), cast to bf16, concat biases.  Do this ONCE per checkpoint.
    If weight_norm g factors are present ('gv'/'gq'/'ga'), fold them here."""
    def eff(wname, gname):
        w = params[wname]
        g = params.get(gname)
        if g is not None:
            w = w * (g / jnp.linalg.norm(w))
        return w
    wv = eff("wv", "gv")
    wq = eff("wq", "gq")
    wa = eff("wa", "ga")
    return dict(
        wv_t=wv.T.astype(jnp.bfloat16),
        wq_t=wq.T.astype(jnp.bfloat16),
        wa_t=wa.T.astype(jnp.bfloat16),
        b_all=jnp.stack([params["bv"], params["bq"], params["ba"]]).astype(jnp.float32),
    )


# ----------------------------------------------------------------------------
# Parameter init (deterministic, matches module shapes)
# ----------------------------------------------------------------------------
def _weight_norm_init(key, out_size, in_size):
    # nn.Linear init: U(-1/sqrt(in), 1/sqrt(in)); weight_norm(dim=None) with
    # g = ||V||_F gives an effective weight equal to V at init.
    kw, kb = jax.random.split(key)
    bound = 1.0 / jnp.sqrt(in_size)
    v_dir = jax.random.uniform(kw, (out_size, in_size), jnp.float32, -bound, bound)
    g = jnp.linalg.norm(v_dir)
    w_eff = g * v_dir / jnp.linalg.norm(v_dir)
    b = jax.random.uniform(kb, (out_size,), jnp.float32, -bound, bound)
    return w_eff, b


def make_params(key, v_features, q_features, mid_features):
    k1, k2, k3 = jax.random.split(key, 3)
    wv, bv = _weight_norm_init(k1, mid_features, v_features)
    wq, bq = _weight_norm_init(k2, mid_features, q_features)
    wa, ba = _weight_norm_init(k3, mid_features, mid_features)
    return dict(wv=wv, bv=bv, wq=wq, bq=bq, wa=wa, ba=ba)


# ----------------------------------------------------------------------------
# Pure-JAX float32 reference (mirrors the PyTorch forward exactly)
# ----------------------------------------------------------------------------
def ref_forward(v, q, atten, p):
    vp = jax.nn.relu(v @ p["wv"].T + p["bv"])                 # (B, No, M)
    qp = jax.nn.relu(q @ p["wq"].T + p["bq"])                 # (B, Nq, M)
    a_t = jnp.swapaxes(jnp.squeeze(atten, 2), 1, 2)           # (B, No, Nq)
    v_ = jnp.einsum("bid,bij->bdj", vp, a_t)                  # (B, M, Nq)
    h = jnp.einsum("bdj,bjd->bd", v_, qp)                     # (B, M)
    out = h @ p["wa"].T + p["ba"]                             # (B, M)
    return out[:, None, :]                                    # (B, 1, M)


if __name__ == "__main__":
    B, num_obj, que_len = 16, 16, 16
    v_features, q_features, mid_features = 128, 128, 128

    key = jax.random.PRNGKey(0)
    kv, kq, ka, kp = jax.random.split(key, 4)

    v = jax.random.normal(kv, (B, num_obj, v_features), jnp.float32)
    q = jax.random.normal(kq, (B, que_len, q_features), jnp.float32)
    atten = jax.random.normal(ka, (B, que_len, 1, num_obj), jnp.float32)

    params = make_params(kp, v_features, q_features, mid_features)
    kparams = prepare_kernel_params(params)   # one-time prep, not per forward call

    fwd = jax.jit(lambda v_, q_, a_: apply_single_attention(v_, q_, a_, kparams))
    out = jax.block_until_ready(fwd(v, q, atten))
    ref = jax.block_until_ready(ref_forward(v, q, atten, params))

    assert out.shape == (B, 1, mid_features)
    # Kernel uses bf16 MXU inputs with f32 accumulation -> compare with a
    # mixed-precision-appropriate tolerance against the exact f32 reference.
    rel_err = jnp.max(jnp.abs(out - ref)) / (jnp.max(jnp.abs(ref)) + 1e-6)
    assert rel_err < 3e-2, f"mismatch vs reference, rel_err={rel_err}"

    print("KERNEL_OK")
</pallas_src>

<mosaic_0001>
module attributes {stable_mosaic.version = 11 : i64} {
  func.func @_apply_single_attention_kernel(%arg0: i32, %arg1: memref<16x16x128xf32, #tpu.memory_space<vmem>>, %arg2: memref<16x16x128xf32, #tpu.memory_space<vmem>>, %arg3: memref<16x16x16xf32, #tpu.memory_space<vmem>>, %arg4: memref<128x128xbf16, #tpu.memory_space<vmem>>, %arg5: memref<128x128xbf16, #tpu.memory_space<vmem>>, %arg6: memref<128x128xbf16, #tpu.memory_space<vmem>>, %arg7: memref<3x128xf32, #tpu.memory_space<vmem>>, %arg8: memref<16x128xf32, #tpu.memory_space<vmem>>) attributes {dimension_semantics = [#tpu.dimension_semantics<parallel>], iteration_bounds = array<i64: 1>, scalar_prefetch = 0 : i64, scratch_operands = 0 : i64, tpu.core_type = #tpu.core_type<tc>, window_params = [{transform_indices = @transform_0, window_bounds = array<i64: 16, 16, 128>}, {transform_indices = @transform_1, window_bounds = array<i64: 16, 16, 128>}, {transform_indices = @transform_2, window_bounds = array<i64: 16, 16, 16>}, {pipeline_mode = #tpu.pipeline_mode<synchronous>, transform_indices = @transform_3, window_bounds = array<i64: 128, 128>}, {pipeline_mode = #tpu.pipeline_mode<synchronous>, transform_indices = @transform_4, window_bounds = array<i64: 128, 128>}, {pipeline_mode = #tpu.pipeline_mode<synchronous>, transform_indices = @transform_5, window_bounds = array<i64: 128, 128>}, {pipeline_mode = #tpu.pipeline_mode<synchronous>, transform_indices = @transform_6, window_bounds = array<i64: 3, 128>}, {transform_indices = @transform_7, window_bounds = array<i64: 16, 128>}]} {
    %c0 = arith.constant 0 : index
    %c0_0 = arith.constant 0 : index
    %0 = vector.load %arg7[%c0, %c0_0] : memref<3x128xf32, #tpu.memory_space<vmem>>, vector<3x128xf32>
    %1 = vector.extract_strided_slice %0 {offsets = [0, 0], sizes = [1, 128], strides = [1, 1]} : vector<3x128xf32> to vector<1x128xf32>
    %2 = vector.extract_strided_slice %0 {offsets = [1, 0], sizes = [1, 128], strides = [1, 1]} : vector<3x128xf32> to vector<1x128xf32>
    %3 = vector.extract_strided_slice %0 {offsets = [2, 0], sizes = [1, 128], strides = [1, 1]} : vector<3x128xf32> to vector<1x128xf32>
    %c0_1 = arith.constant 0 : index
    %c0_2 = arith.constant 0 : index
    %c0_3 = arith.constant 0 : index
    %4 = vector.load %arg1[%c0_1, %c0_2, %c0_3] : memref<16x16x128xf32, #tpu.memory_space<vmem>>, vector<16x16x128xf32>
    %5 = vector.shape_cast %4 : vector<16x16x128xf32> to vector<256x128xf32>
    %6 = arith.truncf %5 : vector<256x128xf32> to vector<256x128xbf16>
    %c0_4 = arith.constant 0 : index
    %c0_5 = arith.constant 0 : index
    %7 = vector.load %arg4[%c0_4, %c0_5] : memref<128x128xbf16, #tpu.memory_space<vmem>>, vector<128x128xbf16>
    %cst = arith.constant dense<0.000000e+00> : vector<256x128xf32>
    %8 = tpu.matmul %6, %7, %cst {dimension_numbers = #tpu.dot_dimension_numbers<[1], [0], [0], [1], [0, 0, 1, 1], [], []>} : vector<256x128xbf16>, vector<128x128xbf16>, vector<256x128xf32> -> vector<256x128xf32>
    %9 = vector.broadcast %1 : vector<1x128xf32> to vector<256x128xf32>
    %10 = arith.addf %8, %9 : vector<256x128xf32>
    %cst_6 = arith.constant 0.000000e+00 : f32
    %11 = vector.broadcast %cst_6 : f32 to vector<256x128xf32>
    %12 = arith.maximumf %10, %11 : vector<256x128xf32>
    %13 = vector.shape_cast %12 : vector<256x128xf32> to vector<16x16x128xf32>
    %14 = arith.truncf %13 : vector<16x16x128xf32> to vector<16x16x128xbf16>
    %c0_7 = arith.constant 0 : index
    %c0_8 = arith.constant 0 : index
    %15 = vector.load %arg5[%c0_7, %c0_8] : memref<128x128xbf16, #tpu.memory_space<vmem>>, vector<128x128xbf16>
    %cst_9 = arith.constant 0.000000e+00 : f32
    %16 = vector.broadcast %cst_9 : f32 to vector<16x128xf32>
    %c0_i32 = arith.constant 0 : i32
    %c8_i32 = arith.constant 8 : i32
    %17 = arith.muli %c0_i32, %c8_i32 : i32
    %18 = tpu.assume_multiple %17, 8 : i32
    %c0_10 = arith.constant 0 : index
    %19 = arith.index_cast %18 : i32 to index
    %c0_11 = arith.constant 0 : index
    %20 = vector.load %arg2[%c0_10, %19, %c0_11] : memref<16x16x128xf32, #tpu.memory_space<vmem>>, vector<16x8x128xf32>
    %21 = vector.shape_cast %20 : vector<16x8x128xf32> to vector<128x128xf32>
    %22 = arith.truncf %21 : vector<128x128xf32> to vector<128x128xbf16>
    %cst_12 = arith.constant dense<0.000000e+00> : vector<128x128xf32>
    %23 = tpu.matmul %22, %15, %cst_12 {dimension_numbers = #tpu.dot_dimension_numbers<[1], [0], [0], [1], [0, 0, 1, 1], [], []>} : vector<128x128xbf16>, vector<128x128xbf16>, vector<128x128xf32> -> vector<128x128xf32>
    %24 = vector.broadcast %2 : vector<1x128xf32> to vector<128x128xf32>
    %25 = arith.addf %23, %24 : vector<128x128xf32>
    %cst_13 = arith.constant 0.000000e+00 : f32
    %26 = vector.broadcast %cst_13 : f32 to vector<128x128xf32>
    %27 = arith.maximumf %25, %26 : vector<128x128xf32>
    %28 = vector.shape_cast %27 : vector<128x128xf32> to vector<16x8x128xf32>
    %c0_14 = arith.constant 0 : index
    %29 = arith.index_cast %18 : i32 to index
    %c0_15 = arith.constant 0 : index
    %30 = vector.load %arg3[%c0_14, %29, %c0_15] : memref<16x16x16xf32, #tpu.memory_space<vmem>>, vector<16x8x16xf32>
    %31 = arith.truncf %30 : vector<16x8x16xf32> to vector<16x8x16xbf16>
    "tpu.trace_start"() <{level = 10 : i32, message = "bqo,bod->bqd"}> : () -> ()
    %cst_16 = arith.constant dense<0.000000e+00> : vector<16x8x128xf32>
    %32 = tpu.matmul %31, %14, %cst_16 {dimension_numbers = #tpu.dot_dimension_numbers<[2], [1], [1], [2], [0, 0, 0, 1, 1, 2], [0], [0]>} : vector<16x8x16xbf16>, vector<16x16x128xbf16>, vector<16x8x128xf32> -> vector<16x8x128xf32>
    "tpu.trace_stop"() : () -> ()
    %33 = arith.mulf %32, %28 : vector<16x8x128xf32>
    %cst_17 = arith.constant dense<0.000000e+00> : vector<16x128xf32>
    %34 = vector.multi_reduction <add>, %33, %cst_17 [1] : vector<16x8x128xf32> to vector<16x128xf32>
    %35 = arith.addf %16, %34 : vector<16x128xf32>
    %c1_i32 = arith.constant 1 : i32
    %c8_i32_18 = arith.constant 8 : i32
    %36 = arith.muli %c1_i32, %c8_i32_18 : i32
    %37 = tpu.assume_multiple %36, 8 : i32
    %c0_19 = arith.constant 0 : index
    %38 = arith.index_cast %37 : i32 to index
    %c0_20 = arith.constant 0 : index
    %39 = vector.load %arg2[%c0_19, %38, %c0_20] : memref<16x16x128xf32, #tpu.memory_space<vmem>>, vector<16x8x128xf32>
    %40 = vector.shape_cast %39 : vector<16x8x128xf32> to vector<128x128xf32>
    %41 = arith.truncf %40 : vector<128x128xf32> to vector<128x128xbf16>
    %cst_21 = arith.constant dense<0.000000e+00> : vector<128x128xf32>
    %42 = tpu.matmul %41, %15, %cst_21 {dimension_numbers = #tpu.dot_dimension_numbers<[1], [0], [0], [1], [0, 0, 1, 1], [], []>} : vector<128x128xbf16>, vector<128x128xbf16>, vector<128x128xf32> -> vector<128x128xf32>
    %43 = vector.broadcast %2 : vector<1x128xf32> to vector<128x128xf32>
    %44 = arith.addf %42, %43 : vector<128x128xf32>
    %cst_22 = arith.constant 0.000000e+00 : f32
    %45 = vector.broadcast %cst_22 : f32 to vector<128x128xf32>
    %46 = arith.maximumf %44, %45 : vector<128x128xf32>
    %47 = vector.shape_cast %46 : vector<128x128xf32> to vector<16x8x128xf32>
    %c0_23 = arith.constant 0 : index
    %48 = arith.index_cast %37 : i32 to index
    %c0_24 = arith.constant 0 : index
    %49 = vector.load %arg3[%c0_23, %48, %c0_24] : memref<16x16x16xf32, #tpu.memory_space<vmem>>, vector<16x8x16xf32>
    %50 = arith.truncf %49 : vector<16x8x16xf32> to vector<16x8x16xbf16>
    "tpu.trace_start"() <{level = 10 : i32, message = "bqo,bod->bqd"}> : () -> ()
    %cst_25 = arith.constant dense<0.000000e+00> : vector<16x8x128xf32>
    %51 = tpu.matmul %50, %14, %cst_25 {dimension_numbers = #tpu.dot_dimension_numbers<[2], [1], [1], [2], [0, 0, 0, 1, 1, 2], [0], [0]>} : vector<16x8x16xbf16>, vector<16x16x128xbf16>, vector<16x8x128xf32> -> vector<16x8x128xf32>
    "tpu.trace_stop"() : () -> ()
    %52 = arith.mulf %51, %47 : vector<16x8x128xf32>
    %cst_26 = arith.constant dense<0.000000e+00> : vector<16x128xf32>
    %53 = vector.multi_reduction <add>, %52, %cst_26 [1] : vector<16x8x128xf32> to vector<16x128xf32>
    %54 = arith.addf %35, %53 : vector<16x128xf32>
    %c2_i32 = arith.constant 2 : i32
    %55 = arith.truncf %54 : vector<16x128xf32> to vector<16x128xbf16>
    %c0_27 = arith.constant 0 : index
    %c0_28 = arith.constant 0 : index
    %56 = vector.load %arg6[%c0_27, %c0_28] : memref<128x128xbf16, #tpu.memory_space<vmem>>, vector<128x128xbf16>
    %cst_29 = arith.constant dense<0.000000e+00> : vector<16x128xf32>
    %57 = tpu.matmul %55, %56, %cst_29 {dimension_numbers = #tpu.dot_dimension_numbers<[1], [0], [0], [1], [0, 0, 1, 1], [], []>} : vector<16x128xbf16>, vector<128x128xbf16>, vector<16x128xf32> -> vector<16x128xf32>
    %58 = vector.broadcast %3 : vector<1x128xf32> to vector<16x128xf32>
    %59 = arith.addf %57, %58 : vector<16x128xf32>
    %c0_30 = arith.constant 0 : index
    %c0_31 = arith.constant 0 : index
    %60 = vector.load %arg8[%c0_30, %c0_31] : memref<16x128xf32, #tpu.memory_space<vmem>>, vector<16x128xf32>
    tpu.vector_store %arg8[%c0_30, %c0_31], %59 {strides = array<i32>} : memref<16x128xf32, #tpu.memory_space<vmem>>, vector<16x128xf32>,
    return
  }
  func.func @transform_0(%arg0: i32) -> (i32, i32, i32) {
    %c0_i32 = arith.constant 0 : i32
    %c0_i32_0 = arith.constant 0 : i32
    %c0_i32_1 = arith.constant 0 : i32
    return %arg0, %c0_i32, %c0_i32_0 : i32, i32, i32
  }
  func.func @transform_1(%arg0: i32) -> (i32, i32, i32) {
    %c0_i32 = arith.constant 0 : i32
    %c0_i32_0 = arith.constant 0 : i32
    %c0_i32_1 = arith.constant 0 : i32
    return %arg0, %c0_i32, %c0_i32_0 : i32, i32, i32
  }
  func.func @transform_2(%arg0: i32) -> (i32, i32, i32) {
    %c0_i32 = arith.constant 0 : i32
    %c0_i32_0 = arith.constant 0 : i32
    %c0_i32_1 = arith.constant 0 : i32
    return %arg0, %c0_i32, %c0_i32_0 : i32, i32, i32
  }
  func.func @transform_3(%arg0: i32) -> (i32, i32) {
    %c0_i32 = arith.constant 0 : i32
    %c0_i32_0 = arith.constant 0 : i32
    %c0_i32_1 = arith.constant 0 : i32
    return %c0_i32, %c0_i32_0 : i32, i32
  }
  func.func @transform_4(%arg0: i32) -> (i32, i32) {
    %c0_i32 = arith.constant 0 : i32
    %c0_i32_0 = arith.constant 0 : i32
    %c0_i32_1 = arith.constant 0 : i32
    return %c0_i32, %c0_i32_0 : i32, i32
  }
  func.func @transform_5(%arg0: i32) -> (i32, i32) {
    %c0_i32 = arith.constant 0 : i32
    %c0_i32_0 = arith.constant 0 : i32
    %c0_i32_1 = arith.constant 0 : i32
    return %c0_i32, %c0_i32_0 : i32, i32
  }
  func.func @transform_6(%arg0: i32) -> (i32, i32) {
    %c0_i32 = arith.constant 0 : i32
    %c0_i32_0 = arith.constant 0 : i32
    %c0_i32_1 = arith.constant 0 : i32
    return %c0_i32, %c0_i32_0 : i32, i32
  }
  func.func @transform_7(%arg0: i32) -> (i32, i32) {
    %c0_i32 = arith.constant 0 : i32
    %c0_i32_0 = arith.constant 0 : i32
    return %arg0, %c0_i32 : i32, i32
  }
}

</mosaic_0001>

<llo_original>
// kernel: _lambda_.1
$region0: #{_lambda_.1}
  #allocation0 [shape = 'u32[]', space=smem, size = 0x4, offset = 0x4, fixed_abs, tag = 'smem constant byte address 0x4 - core index']
  #allocation1 [shape = 'u32[144,128]{1,0:T(1,128)}', space=vmem, size = 0x12000, scoped, tag = 'internal scratch']
  %s0 = inlined_call_operand.hbm [shape: f32[16,16,128], index: 0, kind: input, shape index: {}]
  %s1 = inlined_call_operand.hbm [shape: f32[16,16,128], index: 1, kind: input, shape index: {}]
  %s2 = inlined_call_operand.hbm [shape: f32[16,16,16], index: 2, kind: input, shape index: {}]
  %s3 = inlined_call_operand.hbm [shape: bf16[128,128], index: 3, kind: input, shape index: {}]
  %s4 = inlined_call_operand.hbm [shape: bf16[128,128], index: 4, kind: input, shape index: {}]
  %s5 = inlined_call_operand.hbm [shape: bf16[128,128], index: 5, kind: input, shape index: {}]
  %s6 = inlined_call_operand.vmem [shape: f32[3,128], index: 6, kind: input, shape index: {}]
  %s7 = inlined_call_operand.hbm [shape: f32[16,128], index: 7, kind: output, shape index: {}]
  %s8 = sld [smem:[#allocation0]]
  $region62: #{_lambda_.1} parent=0
    _
  %s10 = ssub.s32 1, %s8
  %s11 = scalar_select 0, %s10, %s8
  $region1: #{_lambda_.1} parent=0
    #allocation2 [shape = 'u8[131072]{0}', space=vmem, size = 0x20000, scoped, tag = 'input window, operand 0, single buffered']
    #allocation3 [shape = 's32[1]{0}', space=sflag, size = 0x4, scoped, tag = 'scoped memory for _lambda_.1']
    #allocation4 [shape = 's32[1]{0}', space=sflag, size = 0x4, scoped, tag = 'scoped memory for _lambda_.1']
    #allocation5 [shape = 'u8[131072]{0}', space=vmem, size = 0x20000, scoped, tag = 'input window, operand 1, single buffered']
    #allocation6 [shape = 's32[1]{0}', space=sflag, size = 0x4, scoped, tag = 'scoped memory for _lambda_.1']
    #allocation7 [shape = 'u8[131072]{0}', space=vmem, size = 0x20000, scoped, tag = 'input window, operand 2, single buffered']
    #allocation8 [shape = 'u8[32768]{0}', space=vmem, size = 0x8000, scoped, tag = 'input window, operand 3, single buffered']
    #allocation9 [shape = 's32[1]{0}', space=sflag, size = 0x4, scoped, tag = 'scoped memory for _lambda_.1']
    #allocation10 [shape = 'u8[32768]{0}', space=vmem, size = 0x8000, scoped, tag = 'input window, operand 4, single buffered']
    #allocation11 [shape = 'u8[32768]{0}', space=vmem, size = 0x8000, scoped, tag = 'input window, operand 5, single buffered']
    #allocation12 [shape = 's32[1]{0}', space=sflag, size = 0x4, scoped, tag = 'scoped memory for _lambda_.1']
    #allocation13 [shape = 'u8[8192]{0}', space=vmem, size = 0x2000, scoped, tag = 'output window, operand 0, single buffered']
    %12 = vsyncpa [#allocation3], 0
    %13 = vsyncpa [#allocation6], 0
    %14 = vsyncpa [#allocation9], 0
    %15 = vsyncpa [#allocation12], 0
    %16 = vsyncpa [#allocation4], 0
    // Predicated region
    $region2: #{_lambda_.1} parent=1 // pred_check
      _
    $region3: #{_lambda_.1} parent=1 // pred_check_branch
      %18 = sbr.rel (0) target = $region5
    $region4: #{_lambda_.1} parent=1 // pred_region
      %s20 = ssub.s32 4096, 4096
      %21 = vsyncadd [#allocation3], %s20
      %s22 = sshll.u32 [#allocation2], 4
      %s23 = int_to_ptr.vmem [resolvable:$true] %s22
      %28 = dma.hbm_to_vmem [thread:$0]  %s0, 4096, %s23, [#allocation3], 128, 128, 8
    $region5: #{_lambda_.1} parent=1 // pred_fallthru
      _
    // Predicated region
    $region6: #{_lambda_.1} parent=1 // pred_check
      _
    $region7: #{_lambda_.1} parent=1 // pred_check_branch
      %30 = sbr.rel (0) target = $region9
    $region8: #{_lambda_.1} parent=1 // pred_region
      %s32 = ssub.s32 4096, 4096
      %33 = vsyncadd [#allocation6], %s32
      %s34 = sshll.u32 [#allocation5], 4
      %s35 = int_to_ptr.vmem [resolvable:$true] %s34
      %40 = dma.hbm_to_vmem [thread:$0]  %s1, 4096, %s35, [#allocation6], 128, 128, 8
    $region9: #{_lambda_.1} parent=1 // pred_fallthru
      _
    // Predicated region
    $region10: #{_lambda_.1} parent=1 // pred_check
      _
    $region11: #{_lambda_.1} parent=1 // pred_check_branch
      %42 = sbr.rel (0) target = $region13
    $region12: #{_lambda_.1} parent=1 // pred_region
      %s44 = ssub.s32 4096, 4096
      %45 = vsyncadd [#allocation6], %s44
      %s46 = sshll.u32 [#allocation7], 4
      %s47 = int_to_ptr.vmem [resolvable:$true] %s46
      %52 = dma.hbm_to_vmem [thread:$0]  %s2, 4096, %s47, [#allocation6], 128, 128, 8
    $region13: #{_lambda_.1} parent=1 // pred_fallthru
      _
    // Predicated region
    $region14: #{_lambda_.1} parent=1 // pred_check
      _
    $region15: #{_lambda_.1} parent=1 // pred_check_branch
      %54 = sbr.rel (0) target = $region17
    $region16: #{_lambda_.1} parent=1 // pred_region
      %s56 = ssub.s32 1024, 1024
      %57 = vsyncadd [#allocation9], %s56
      %s58 = sshll.u32 [#allocation8], 4
      %s59 = int_to_ptr.vmem [resolvable:$true] %s58
      %64 = dma.hbm_to_vmem [thread:$0]  %s3, 1024, %s59, [#allocation9], 64, 64, 4
    $region17: #{_lambda_.1} parent=1 // pred_fallthru
      _
    // Predicated region
    $region18: #{_lambda_.1} parent=1 // pred_check
      _
    $region19: #{_lambda_.1} parent=1 // pred_check_branch
      %66 = sbr.rel (0) target = $region21
    $region20: #{_lambda_.1} parent=1 // pred_region
      %s68 = ssub.s32 1024, 1024
      %69 = vsyncadd [#allocation9], %s68
      %s70 = sshll.u32 [#allocation10], 4
      %s71 = int_to_ptr.vmem [resolvable:$true] %s70
      %76 = dma.hbm_to_vmem [thread:$0]  %s4, 1024, %s71, [#allocation9], 64, 64, 4
    $region21: #{_lambda_.1} parent=1 // pred_fallthru
      _
    // Predicated region
    $region22: #{_lambda_.1} parent=1 // pred_check
      _
    $region23: #{_lambda_.1} parent=1 // pred_check_branch
      %78 = sbr.rel (0) target = $region25
    $region24: #{_lambda_.1} parent=1 // pred_region
      %s80 = ssub.s32 1024, 1024
      %81 = vsyncadd [#allocation12], %s80
      %s82 = sshll.u32 [#allocation11], 4
      %s83 = int_to_ptr.vmem [resolvable:$true] %s82
      %88 = dma.hbm_to_vmem [thread:$0]  %s5, 1024, %s83, [#allocation12], 64, 64, 4
    $region25: #{_lambda_.1} parent=1 // pred_fallthru
      _
    // Predicated region
    $region26: #{_lambda_.1} parent=1 // pred_check
      _
    $region27: #{_lambda_.1} parent=1 // pred_check_branch
      %90 = sbr.rel (0) target = $region29
    $region28: #{_lambda_.1} parent=1 // pred_region
      _
    $region29: #{_lambda_.1} parent=1 // pred_fallthru
      _
    // Predicated region
    $region30: #{_lambda_.1} parent=1 // pred_check
      _
    $region31: #{_lambda_.1} parent=1 // pred_check_branch
      %92 = sbr.rel (0) target = $region33
    $region32: #{_lambda_.1} parent=1 // pred_region
      %93 = dma.done [#allocation3], 4096
    $region33: #{_lambda_.1} parent=1 // pred_fallthru
      _
    // Predicated region
    $region34: #{_lambda_.1} parent=1 // pred_check
      _
    $region35: #{_lambda_.1} parent=1 // pred_check_branch
      %95 = sbr.rel (0) target = $region37
    $region36: #{_lambda_.1} parent=1 // pred_region
      %96 = dma.done [#allocation6], 4096
    $region37: #{_lambda_.1} parent=1 // pred_fallthru
      _
    // Predicated region
    $region38: #{_lambda_.1} parent=1 // pred_check
      _
    $region39: #{_lambda_.1} parent=1 // pred_check_branch
      %98 = sbr.rel (0) target = $region41
    $region40: #{_lambda_.1} parent=1 // pred_region
      %99 = dma.done [#allocation6], 4096
    $region41: #{_lambda_.1} parent=1 // pred_fallthru
      _
    // Predicated region
    $region42: #{_lambda_.1} parent=1 // pred_check
      _
    $region43: #{_lambda_.1} parent=1 // pred_check_branch
      %101 = sbr.rel (0) target = $region45
    $region44: #{_lambda_.1} parent=1 // pred_region
      %102 = dma.done [#allocation9], 1024
    $region45: #{_lambda_.1} parent=1 // pred_fallthru
      _
    // Predicated region
    $region46: #{_lambda_.1} parent=1 // pred_check
      _
    $region47: #{_lambda_.1} parent=1 // pred_check_branch
      %104 = sbr.rel (0) target = $region49
    $region48: #{_lambda_.1} parent=1 // pred_region
      %105 = dma.done [#allocation9], 1024
    $region49: #{_lambda_.1} parent=1 // pred_fallthru
      _
    // Predicated region
    $region50: #{_lambda_.1} parent=1 // pred_check
      _
    $region51: #{_lambda_.1} parent=1 // pred_check_branch
      %107 = sbr.rel (0) target = $region53
    $region52: #{_lambda_.1} parent=1 // pred_region
      %108 = dma.done [#allocation12], 1024
    $region53: #{_lambda_.1} parent=1 // pred_fallthru
      _
    %v110 = vld [vmem:[%s6] sm:$0x7]
    %v111 = vld [vmem:[#allocation2] sm:$0xff]
    %v112 = vld [vmem:[#allocation2 + $0x8] sm:$0xff]
    %v113 = vld [vmem:[#allocation2 + $0x10] sm:$0xff]
    %v114 = vld [vmem:[#allocation2 + $0x18] sm:$0xff]
    %v115 = vld [vmem:[#allocation2 + $0x20] sm:$0xff]
    %v116 = vld [vmem:[#allocation2 + $0x28] sm:$0xff]
    %v117 = vld [vmem:[#allocation2 + $0x30] sm:$0xff]
    %v118 = vld [vmem:[#allocation2 + $0x38] sm:$0xff]
    %v119 = vld [vmem:[#allocation2 + $0x40] sm:$0xff]
    %v120 = vld [vmem:[#allocation2 + $0x48] sm:$0xff]
    %v121 = vld [vmem:[#allocation2 + $0x50] sm:$0xff]
    %v122 = vld [vmem:[#allocation2 + $0x58] sm:$0xff]
    %v123 = vld [vmem:[#allocation2 + $0x60] sm:$0xff]
    %v124 = vld [vmem:[#allocation2 + $0x68] sm:$0xff]
    %v125 = vld [vmem:[#allocation2 + $0x70] sm:$0xff]
    %v126 = vld [vmem:[#allocation2 + $0x78] sm:$0xff]
    %v127 = vld [vmem:[#allocation2 + $0x80] sm:$0xff]
    %v128 = vld [vmem:[#allocation2 + $0x88] sm:$0xff]
    %v129 = vld [vmem:[#allocation2 + $0x90] sm:$0xff]
    %v130 = vld [vmem:[#allocation2 + $0x98] sm:$0xff]
    %v131 = vld [vmem:[#allocation2 + $0xa0] sm:$0xff]
    %v132 = vld [vmem:[#allocation2 + $0xa8] sm:$0xff]
    %v133 = vld [vmem:[#allocation2 + $0xb0] sm:$0xff]
    %v134 = vld [vmem:[#allocation2 + $0xb8] sm:$0xff]
    %v135 = vld [vmem:[#allocation2 + $0xc0] sm:$0xff]
    %v136 = vld [vmem:[#allocation2 + $0xc8] sm:$0xff]
    %v137 = vld [vmem:[#allocation2 + $0xd0] sm:$0xff]
    %v138 = vld [vmem:[#allocation2 + $0xd8] sm:$0xff]
    %v139 = vld [vmem:[#allocation2 + $0xe0] sm:$0xff]
    %v140 = vld [vmem:[#allocation2 + $0xe8] sm:$0xff]
    %v141 = vld [vmem:[#allocation2 + $0xf0] sm:$0xff]
    %v142 = vld [vmem:[#allocation2 + $0xf8] sm:$0xff]
    %v143 = vpack.c.bf16 %v112, %v111
    %v144 = vpack.c.bf16 %v114, %v113
    %v145 = vpack.c.bf16 %v116, %v115
    %v146 = vpack.c.bf16 %v118, %v117
    %v147 = vpack.c.bf16 %v120, %v119
    %v148 = vpack.c.bf16 %v122, %v121
    %v149 = vpack.c.bf16 %v124, %v123
    %v150 = vpack.c.bf16 %v126, %v125
    %v151 = vpack.c.bf16 %v128, %v127
    %v152 = vpack.c.bf16 %v130, %v129
    %v153 = vpack.c.bf16 %v132, %v131
    %v154 = vpack.c.bf16 %v134, %v133
    %v155 = vpack.c.bf16 %v136, %v135
    %v156 = vpack.c.bf16 %v138, %v137
    %v157 = vpack.c.bf16 %v140, %v139
    %v158 = vpack.c.bf16 %v142, %v141
    %v159 = vld [vmem:[#allocation8] sm:$0xf]
    %v160 = vld [vmem:[#allocation8 + $0x4] sm:$0xf]
    %v161 = vld [vmem:[#allocation8 + $0x8] sm:$0xf]
    %v162 = vld [vmem:[#allocation8 + $0xc] sm:$0xf]
    %v163 = vld [vmem:[#allocation8 + $0x10] sm:$0xf]
    %v164 = vld [vmem:[#allocation8 + $0x14] sm:$0xf]
    %v165 = vld [vmem:[#allocation8 + $0x18] sm:$0xf]
    %v166 = vld [vmem:[#allocation8 + $0x1c] sm:$0xf]
    %v167 = vld [vmem:[#allocation8 + $0x20] sm:$0xf]
    %v168 = vld [vmem:[#allocation8 + $0x24] sm:$0xf]
    %v169 = vld [vmem:[#allocation8 + $0x28] sm:$0xf]
    %v170 = vld [vmem:[#allocation8 + $0x2c] sm:$0xf]
    %v171 = vld [vmem:[#allocation8 + $0x30] sm:$0xf]
    %v172 = vld [vmem:[#allocation8 + $0x34] sm:$0xf]
    %v173 = vld [vmem:[#allocation8 + $0x38] sm:$0xf]
    %v174 = vld [vmem:[#allocation8 + $0x3c] sm:$0xf]
    %v175 = vlaneseq
    %v176 = vshrl.u32 %v175, 7
    %v177 = vsub.s32 0, %v176
    %v178 = vrot.slane %v110, %v177
    %v195 = vunpack.c.l.b16 %v159
    %v196 = vunpack.c.l.b16 %v160
    %v197 = vunpack.c.l.b16 %v161
    %v198 = vunpack.c.l.b16 %v162
    %v199 = vunpack.c.l.b16 %v163
    %v200 = vunpack.c.l.b16 %v164
    %v201 = vunpack.c.l.b16 %v165
    %v202 = vunpack.c.l.b16 %v166
    %v203 = vunpack.c.l.b16 %v167
    %v204 = vunpack.c.l.b16 %v168
    %v205 = vunpack.c.l.b16 %v169
    %v206 = vunpack.c.l.b16 %v170
    %v207 = vunpack.c.l.b16 %v171
    %v208 = vunpack.c.l.b16 %v172
    %v209 = vunpack.c.l.b16 %v173
    %v210 = vunpack.c.l.b16 %v174
    %v211 = vpack.c.b16 %v196, %v195
    %v212 = vpack.c.b16 %v198, %v197
    %v213 = vpack.c.b16 %v200, %v199
    %v214 = vpack.c.b16 %v202, %v201
    %v215 = vpack.c.b16 %v204, %v203
    %v216 = vpack.c.b16 %v206, %v205
    %v217 = vpack.c.b16 %v208, %v207
    %v218 = vpack.c.b16 %v210, %v209
    %227 = vmatprep.subr.bf16.mxu0 0
    %228 = vmatpush1.bf16.msra.mxu0 %v211
    %229 = vmatprep.subr.bf16.mxu0 0
    %230 = vmatpush1.bf16.msra.mxu0 %v212
    %231 = vmatprep.subr.bf16.mxu0 0
    %232 = vmatpush1.bf16.msra.mxu0 %v213
    %233 = vmatprep.subr.bf16.mxu0 0
    %234 = vmatpush1.bf16.msra.mxu0 %v214
    %235 = vmatprep.subr.bf16.mxu0 0
    %236 = vmatpush1.bf16.msra.mxu0 %v215
    %237 = vmatprep.subr.bf16.mxu0 0
    %238 = vmatpush1.bf16.msra.mxu0 %v216
    %239 = vmatprep.subr.bf16.mxu0 0
    %240 = vmatpush1.bf16.msra.mxu0 %v217
    %241 = vmatprep.subr.bf16.mxu0 0
    %242 = vmatpush1.bf16.msra.mxu0 %v218
    %243 = vmatprep.subr.bf16.mxu0 0
    %244 = vmatpush1.bf16.msra.mxu0 0
    %245 = vmatprep.subr.bf16.mxu0 0
    %246 = vmatpush1.bf16.msra.mxu0 0
    %247 = vmatprep.subr.bf16.mxu0 0
    %248 = vmatpush1.bf16.msra.mxu0 0
    %249 = vmatprep.subr.bf16.mxu0 0
    %250 = vmatpush1.bf16.msra.mxu0 0
    %251 = vmatprep.subr.bf16.mxu0 0
    %252 = vmatpush1.bf16.msra.mxu0 0
    %253 = vmatprep.subr.bf16.mxu0 0
    %254 = vmatpush1.bf16.msra.mxu0 0
    %255 = vmatprep.subr.bf16.mxu0 0
    %256 = vmatpush1.bf16.msra.mxu0 0
    %257 = vmatprep.subr.bf16.mxu0 0
    %258 = vmatpush1.bf16.msra.mxu0 0
    %259 = vmatprep.mubr.bf16.mxu0 0
    %260 = vmatmul.mubr.bf16.gmra.mrb[0].mxu0 %v143
    %v261 = vpop.f32.mrb[0].mxu0
    %v262 = vadd.f32 %v178, %v261
    %v263 = vpop.f32.mrb[0].mxu0
    %v264 = vpop.f32.mrb[0].mxu0
    %v265 = vadd.f32 %v178, %v264
    %v266 = vpop.f32.mrb[0].mxu0
    %267 = vmatprep.mubr.bf16.mxu0 0
    %268 = vmatmul.mubr.bf16.gmra.mrb[0].mxu0 %v144
    %v269 = vpop.f32.mrb[0].mxu0
    %v270 = vadd.f32 %v178, %v269
    %v271 = vpop.f32.mrb[0].mxu0
    %v272 = vpop.f32.mrb[0].mxu0
    %v273 = vadd.f32 %v178, %v272
    %v274 = vpop.f32.mrb[0].mxu0
    %275 = vmatprep.mubr.bf16.mxu0 0
    %276 = vmatmul.mubr.bf16.gmra.mrb[0].mxu0 %v145
    %v277 = vpop.f32.mrb[0].mxu0
    %v278 = vadd.f32 %v178, %v277
    %v279 = vpop.f32.mrb[0].mxu0
    %v280 = vpop.f32.mrb[0].mxu0
    %v281 = vadd.f32 %v178, %v280
    %v282 = vpop.f32.mrb[0].mxu0
    %283 = vmatprep.mubr.bf16.mxu0 0
    %284 = vmatmul.mubr.bf16.gmra.mrb[0].mxu0 %v146
    %v285 = vpop.f32.mrb[0].mxu0
    %v286 = vadd.f32 %v178, %v285
    %v287 = vpop.f32.mrb[0].mxu0
    %v288 = vpop.f32.mrb[0].mxu0
    %v289 = vadd.f32 %v178, %v288
    %v290 = vpop.f32.mrb[0].mxu0
    %291 = vmatprep.mubr.bf16.mxu0 0
    %292 = vmatmul.mubr.bf16.gmra.mrb[0].mxu0 %v147
    %v293 = vpop.f32.mrb[0].mxu0
    %v294 = vadd.f32 %v178, %v293
    %v295 = vpop.f32.mrb[0].mxu0
    %v296 = vpop.f32.mrb[0].mxu0
    %v297 = vadd.f32 %v178, %v296
    %v298 = vpop.f32.mrb[0].mxu0
    %299 = vmatprep.mubr.bf16.mxu0 0
    %300 = vmatmul.mubr.bf16.gmra.mrb[0].mxu0 %v148
    %v301 = vpop.f32.mrb[0].mxu0
    %v302 = vadd.f32 %v178, %v301
    %v303 = vpop.f32.mrb[0].mxu0
    %v304 = vpop.f32.mrb[0].mxu0
    %v305 = vadd.f32 %v178, %v304
    %v306 = vpop.f32.mrb[0].mxu0
    %307 = vmatprep.mubr.bf16.mxu0 0
    %308 = vmatmul.mubr.bf16.gmra.mrb[0].mxu0 %v149
    %v309 = vpop.f32.mrb[0].mxu0
    %v310 = vadd.f32 %v178, %v309
    %v311 = vpop.f32.mrb[0].mxu0
    %v312 = vpop.f32.mrb[0].mxu0
    %v313 = vadd.f32 %v178, %v312
    %v314 = vpop.f32.mrb[0].mxu0
    %315 = vmatprep.mubr.bf16.mxu0 0
    %316 = vmatmul.mubr.bf16.gmra.mrb[0].mxu0 %v150
    %v317 = vpop.f32.mrb[0].mxu0
    %v318 = vadd.f32 %v178, %v317
    %v319 = vpop.f32.mrb[0].mxu0
    %v320 = vpop.f32.mrb[0].mxu0
    %v321 = vadd.f32 %v178, %v320
    %v322 = vpop.f32.mrb[0].mxu0
    %323 = vmatprep.mubr.bf16.mxu0 0
    %324 = vmatmul.mubr.bf16.gmra.mrb[0].mxu0 %v151
    %v325 = vpop.f32.mrb[0].mxu0
    %v326 = vadd.f32 %v178, %v325
    %v327 = vpop.f32.mrb[0].mxu0
    %v328 = vpop.f32.mrb[0].mxu0
    %v329 = vadd.f32 %v178, %v328
    %v330 = vpop.f32.mrb[0].mxu0
    %331 = vmatprep.mubr.bf16.mxu0 0
    %332 = vmatmul.mubr.bf16.gmra.mrb[0].mxu0 %v152
    %v333 = vpop.f32.mrb[0].mxu0
    %v334 = vadd.f32 %v178, %v333
    %v335 = vpop.f32.mrb[0].mxu0
    %v336 = vpop.f32.mrb[0].mxu0
    %v337 = vadd.f32 %v178, %v336
    %v338 = vpop.f32.mrb[0].mxu0
    %339 = vmatprep.mubr.bf16.mxu0 0
    %340 = vmatmul.mubr.bf16.gmra.mrb[0].mxu0 %v153
    %v341 = vpop.f32.mrb[0].mxu0
    %v342 = vadd.f32 %v178, %v341
    %v343 = vpop.f32.mrb[0].mxu0
    %v344 = vpop.f32.mrb[0].mxu0
    %v345 = vadd.f32 %v178, %v344
    %v346 = vpop.f32.mrb[0].mxu0
    %347 = vmatprep.mubr.bf16.mxu0 0
    %348 = vmatmul.mubr.bf16.gmra.mrb[0].mxu0 %v154
    %v349 = vpop.f32.mrb[0].mxu0
    %v350 = vadd.f32 %v178, %v349
    %v351 = vpop.f32.mrb[0].mxu0
    %v352 = vpop.f32.mrb[0].mxu0
    %v353 = vadd.f32 %v178, %v352
    %v354 = vpop.f32.mrb[0].mxu0
    %355 = vmatprep.mubr.bf16.mxu0 0
    %356 = vmatmul.mubr.bf16.gmra.mrb[0].mxu0 %v155
    %v357 = vpop.f32.mrb[0].mxu0
    %v358 = vadd.f32 %v178, %v357
    %v359 = vpop.f32.mrb[0].mxu0
    %v360 = vpop.f32.mrb[0].mxu0
    %v361 = vadd.f32 %v178, %v360
    %v362 = vpop.f32.mrb[0].mxu0
    %363 = vmatprep.mubr.bf16.mxu0 0
    %364 = vmatmul.mubr.bf16.gmra.mrb[0].mxu0 %v156
    %v365 = vpop.f32.mrb[0].mxu0
    %v366 = vadd.f32 %v178, %v365
    %v367 = vpop.f32.mrb[0].mxu0
    %v368 = vpop.f32.mrb[0].mxu0
    %v369 = vadd.f32 %v178, %v368
    %v370 = vpop.f32.mrb[0].mxu0
    %371 = vmatprep.mubr.bf16.mxu0 0
    %372 = vmatmul.mubr.bf16.gmra.mrb[0].mxu0 %v157
    %v373 = vpop.f32.mrb[0].mxu0
    %v374 = vadd.f32 %v178, %v373
    %v375 = vpop.f32.mrb[0].mxu0
    %v376 = vpop.f32.mrb[0].mxu0
    %v377 = vadd.f32 %v178, %v376
    %v378 = vpop.f32.mrb[0].mxu0
    %379 = vmatprep.mubr.bf16.mxu0 0
    %380 = vmatmul.mubr.bf16.gmra.mrb[0].mxu0 %v158
    %v381 = vpop.f32.mrb[0].mxu0
    %v382 = vadd.f32 %v178, %v381
    %v383 = vpop.f32.mrb[0].mxu0
    %v384 = vpop.f32.mrb[0].mxu0
    %v385 = vadd.f32 %v178, %v384
    %v386 = vpop.f32.mrb[0].mxu0
    %387 = vdwg.mxu0
    %v388 = vmax.f32 %v262, 0.0
    %v389 = vmax.f32 %v265, 0.0
    %v390 = vmax.f32 %v270, 0.0
    %v391 = vmax.f32 %v273, 0.0
    %v392 = vmax.f32 %v278, 0.0
    %v393 = vmax.f32 %v281, 0.0
    %v394 = vmax.f32 %v286, 0.0
    %v395 = vmax.f32 %v289, 0.0
    %v396 = vmax.f32 %v294, 0.0
    %v397 = vmax.f32 %v297, 0.0
    %v398 = vmax.f32 %v302, 0.0
    %v399 = vmax.f32 %v305, 0.0
    %v400 = vmax.f32 %v310, 0.0
    %v401 = vmax.f32 %v313, 0.0
    %v402 = vmax.f32 %v318, 0.0
    %v403 = vmax.f32 %v321, 0.0
    %v404 = vmax.f32 %v326, 0.0
    %v405 = vmax.f32 %v329, 0.0
    %v406 = vmax.f32 %v334, 0.0
    %v407 = vmax.f32 %v337, 0.0
    %v408 = vmax.f32 %v342, 0.0
    %v409 = vmax.f32 %v345, 0.0
    %v410 = vmax.f32 %v350, 0.0
    %v411 = vmax.f32 %v353, 0.0
    %v412 = vmax.f32 %v358, 0.0
    %v413 = vmax.f32 %v361, 0.0
    %v414 = vmax.f32 %v366, 0.0
    %v415 = vmax.f32 %v369, 0.0
    %v416 = vmax.f32 %v374, 0.0
    %v417 = vmax.f32 %v377, 0.0
    %v418 = vmax.f32 %v382, 0.0
    %v419 = vmax.f32 %v385, 0.0
    %v420 = vpack.c.bf16 %v389, %v388
    %v421 = vpack.c.bf16 %v391, %v390
    %v422 = vpack.c.bf16 %v393, %v392
    %v423 = vpack.c.bf16 %v395, %v394
    %v424 = vpack.c.bf16 %v397, %v396
    %v425 = vpack.c.bf16 %v399, %v398
    %v426 = vpack.c.bf16 %v401, %v400
    %v427 = vpack.c.bf16 %v403, %v402
    %v428 = vpack.c.bf16 %v405, %v404
    %v429 = vpack.c.bf16 %v407, %v406
    %v430 = vpack.c.bf16 %v409, %v408
    %v431 = vpack.c.bf16 %v411, %v410
    %v432 = vpack.c.bf16 %v413, %v412
    %v433 = vpack.c.bf16 %v415, %v414
    %v434 = vpack.c.bf16 %v417, %v416
    %v435 = vpack.c.bf16 %v419, %v418
    %v436 = vld [vmem:[#allocation10] sm:$0xf]
    %v437 = vld [vmem:[#allocation10 + $0x4] sm:$0xf]
    %v438 = vld [vmem:[#allocation10 + $0x8] sm:$0xf]
    %v439 = vld [vmem:[#allocation10 + $0xc] sm:$0xf]
    %v440 = vld [vmem:[#allocation10 + $0x10] sm:$0xf]
    %v441 = vld [vmem:[#allocation10 + $0x14] sm:$0xf]
    %v442 = vld [vmem:[#allocation10 + $0x18] sm:$0xf]
    %v443 = vld [vmem:[#allocation10 + $0x1c] sm:$0xf]
    %v444 = vld [vmem:[#allocation10 + $0x20] sm:$0xf]
    %v445 = vld [vmem:[#allocation10 + $0x24] sm:$0xf]
    %v446 = vld [vmem:[#allocation10 + $0x28] sm:$0xf]
    %v447 = vld [vmem:[#allocation10 + $0x2c] sm:$0xf]
    %v448 = vld [vmem:[#allocation10 + $0x30] sm:$0xf]
    %v449 = vld [vmem:[#allocation10 + $0x34] sm:$0xf]
    %v450 = vld [vmem:[#allocation10 + $0x38] sm:$0xf]
    %v451 = vld [vmem:[#allocation10 + $0x3c] sm:$0xf]
    %v452 = vld [vmem:[#allocation5] sm:$0xff]
    %v453 = vld [vmem:[#allocation5 + $0x10] sm:$0xff]
    %v454 = vld [vmem:[#allocation5 + $0x20] sm:$0xff]
    %v455 = vld [vmem:[#allocation5 + $0x30] sm:$0xff]
    %v456 = vld [vmem:[#allocation5 + $0x40] sm:$0xff]
    %v457 = vld [vmem:[#allocation5 + $0x50] sm:$0xff]
    %v458 = vld [vmem:[#allocation5 + $0x60] sm:$0xff]
    %v459 = vld [vmem:[#allocation5 + $0x70] sm:$0xff]
    %v460 = vld [vmem:[#allocation5 + $0x80] sm:$0xff]
    %v461 = vld [vmem:[#allocation5 + $0x90] sm:$0xff]
    %v462 = vld [vmem:[#allocation5 + $0xa0] sm:$0xff]
    %v463 = vld [vmem:[#allocation5 + $0xb0] sm:$0xff]
    %v464 = vld [vmem:[#allocation5 + $0xc0] sm:$0xff]
    %v465 = vld [vmem:[#allocation5 + $0xd0] sm:$0xff]
    %v466 = vld [vmem:[#allocation5 + $0xe0] sm:$0xff]
    %v467 = vld [vmem:[#allocation5 + $0xf0] sm:$0xff]
    %v468 = vpack.c.bf16 %v453, %v452
    %v469 = vpack.c.bf16 %v455, %v454
    %v470 = vpack.c.bf16 %v457, %v456
    %v471 = vpack.c.bf16 %v459, %v458
    %v472 = vpack.c.bf16 %v461, %v460
    %v473 = vpack.c.bf16 %v463, %v462
    %v474 = vpack.c.bf16 %v465, %v464
    %v475 = vpack.c.bf16 %v467, %v466
    %v476 = vlaneseq
    %v477 = vshrl.u32 %v476, 7
    %v478 = vsub.s32 1, %v477
    %v479 = vrot.slane %v110, %v478
    %v496 = vunpack.c.l.b16 %v436
    %v497 = vunpack.c.l.b16 %v437
    %v498 = vunpack.c.l.b16 %v438
    %v499 = vunpack.c.l.b16 %v439
    %v500 = vunpack.c.l.b16 %v440
    %v501 = vunpack.c.l.b16 %v441
    %v502 = vunpack.c.l.b16 %v442
    %v503 = vunpack.c.l.b16 %v443
    %v504 = vunpack.c.l.b16 %v444
    %v505 = vunpack.c.l.b16 %v445
    %v506 = vunpack.c.l.b16 %v446
    %v507 = vunpack.c.l.b16 %v447
    %v508 = vunpack.c.l.b16 %v448
    %v509 = vunpack.c.l.b16 %v449
    %v510 = vunpack.c.l.b16 %v450
    %v511 = vunpack.c.l.b16 %v451
    %v512 = vpack.c.b16 %v497, %v496
    %v513 = vpack.c.b16 %v499, %v498
    %v514 = vpack.c.b16 %v501, %v500
    %v515 = vpack.c.b16 %v503, %v502
    %v516 = vpack.c.b16 %v505, %v504
    %v517 = vpack.c.b16 %v507, %v506
    %v518 = vpack.c.b16 %v509, %v508
    %v519 = vpack.c.b16 %v511, %v510
    %528 = vmatprep.subr.bf16.mxu0 0
    %529 = vmatpush1.bf16.msra.mxu0 %v512
    %530 = vmatprep.subr.bf16.mxu0 0
    %531 = vmatpush1.bf16.msra.mxu0 %v513
    %532 = vmatprep.subr.bf16.mxu0 0
    %533 = vmatpush1.bf16.msra.mxu0 %v514
    %534 = vmatprep.subr.bf16.mxu0 0
    %535 = vmatpush1.bf16.msra.mxu0 %v515
    %536 = vmatprep.subr.bf16.mxu0 0
    %537 = vmatpush1.bf16.msra.mxu0 %v516
    %538 = vmatprep.subr.bf16.mxu0 0
    %539 = vmatpush1.bf16.msra.mxu0 %v517
    %540 = vmatprep.subr.bf16.mxu0 0
    %541 = vmatpush1.bf16.msra.mxu0 %v518
    %542 = vmatprep.subr.bf16.mxu0 0
    %543 = vmatpush1.bf16.msra.mxu0 %v519
    %544 = vmatprep.subr.bf16.mxu0 0
    %545 = vmatpush1.bf16.msra.mxu0 0
    %546 = vmatprep.subr.bf16.mxu0 0
    %547 = vmatpush1.bf16.msra.mxu0 0
    %548 = vmatprep.subr.bf16.mxu0 0
    %549 = vmatpush1.bf16.msra.mxu0 0
    %550 = vmatprep.subr.bf16.mxu0 0
    %551 = vmatpush1.bf16.msra.mxu0 0
    %552 = vmatprep.subr.bf16.mxu0 0
    %553 = vmatpush1.bf16.msra.mxu0 0
    %554 = vmatprep.subr.bf16.mxu0 0
    %555 = vmatpush1.bf16.msra.mxu0 0
    %556 = vmatprep.subr.bf16.mxu0 0
    %557 = vmatpush1.bf16.msra.mxu0 0
    %558 = vmatprep.subr.bf16.mxu0 0
    %559 = vmatpush1.bf16.msra.mxu0 0
    %560 = vmatprep.mubr.bf16.mxu0 0
    %561 = vmatmul.mubr.bf16.gmra.mrb[0].mxu0 %v468
    %v562 = vpop.f32.mrb[0].mxu0
    %v563 = vadd.f32 %v479, %v562
    %v564 = vpop.f32.mrb[0].mxu0
    %v565 = vpop.f32.mrb[0].mxu0
    %v566 = vadd.f32 %v479, %v565
    %v567 = vpop.f32.mrb[0].mxu0
    %568 = vmatprep.mubr.bf16.mxu0 0
    %569 = vmatmul.mubr.bf16.gmra.mrb[0].mxu0 %v469
    %v570 = vpop.f32.mrb[0].mxu0
    %v571 = vadd.f32 %v479, %v570
    %v572 = vpop.f32.mrb[0].mxu0
    %v573 = vpop.f32.mrb[0].mxu0
    %v574 = vadd.f32 %v479, %v573
    %v575 = vpop.f32.mrb[0].mxu0
    %576 = vmatprep.mubr.bf16.mxu0 0
    %577 = vmatmul.mubr.bf16.gmra.mrb[0].mxu0 %v470
    %v578 = vpop.f32.mrb[0].mxu0
    %v579 = vadd.f32 %v479, %v578
    %v580 = vpop.f32.mrb[0].mxu0
    %v581 = vpop.f32.mrb[0].mxu0
    %v582 = vadd.f32 %v479, %v581
    %v583 = vpop.f32.mrb[0].mxu0
    %584 = vmatprep.mubr.bf16.mxu0 0
    %585 = vmatmul.mubr.bf16.gmra.mrb[0].mxu0 %v471
    %v586 = vpop.f32.mrb[0].mxu0
    %v587 = vadd.f32 %v479, %v586
    %v588 = vpop.f32.mrb[0].mxu0
    %v589 = vpop.f32.mrb[0].mxu0
    %v590 = vadd.f32 %v479, %v589
    %v591 = vpop.f32.mrb[0].mxu0
    %592 = vmatprep.mubr.bf16.mxu0 0
    %593 = vmatmul.mubr.bf16.gmra.mrb[0].mxu0 %v472
    %v594 = vpop.f32.mrb[0].mxu0
    %v595 = vadd.f32 %v479, %v594
    %v596 = vpop.f32.mrb[0].mxu0
    %v597 = vpop.f32.mrb[0].mxu0
    %v598 = vadd.f32 %v479, %v597
    %v599 = vpop.f32.mrb[0].mxu0
    %600 = vmatprep.mubr.bf16.mxu0 0
    %601 = vmatmul.mubr.bf16.gmra.mrb[0].mxu0 %v473
    %v602 = vpop.f32.mrb[0].mxu0
    %v603 = vadd.f32 %v479, %v602
    %v604 = vpop.f32.mrb[0].mxu0
    %v605 = vpop.f32.mrb[0].mxu0
    %v606 = vadd.f32 %v479, %v605
    %v607 = vpop.f32.mrb[0].mxu0
    %608 = vmatprep.mubr.bf16.mxu0 0
    %609 = vmatmul.mubr.bf16.gmra.mrb[0].mxu0 %v474
    %v610 = vpop.f32.mrb[0].mxu0
    %v611 = vadd.f32 %v479, %v610
    %v612 = vpop.f32.mrb[0].mxu0
    %v613 = vpop.f32.mrb[0].mxu0
    %v614 = vadd.f32 %v479, %v613
    %v615 = vpop.f32.mrb[0].mxu0
    %616 = vmatprep.mubr.bf16.mxu0 0
    %617 = vmatmul.mubr.bf16.gmra.mrb[0].mxu0 %v475
    %v618 = vpop.f32.mrb[0].mxu0
    %v619 = vadd.f32 %v479, %v618
    %v620 = vpop.f32.mrb[0].mxu0
    %v621 = vpop.f32.mrb[0].mxu0
    %v622 = vadd.f32 %v479, %v621
    %v623 = vpop.f32.mrb[0].mxu0
    %624 = vdwg.mxu0
    %v625 = vmax.f32 %v563, 0.0
    %v626 = vmax.f32 %v566, 0.0
    %v627 = vmax.f32 %v571, 0.0
    %v628 = vmax.f32 %v574, 0.0
    %v629 = vmax.f32 %v579, 0.0
    %v630 = vmax.f32 %v582, 0.0
    %v631 = vmax.f32 %v587, 0.0
    %v632 = vmax.f32 %v590, 0.0
    %v633 = vmax.f32 %v595, 0.0
    %v634 = vmax.f32 %v598, 0.0
    %v635 = vmax.f32 %v603, 0.0
    %v636 = vmax.f32 %v606, 0.0
    %v637 = vmax.f32 %v611, 0.0
    %v638 = vmax.f32 %v614, 0.0
    %v639 = vmax.f32 %v619, 0.0
    %v640 = vmax.f32 %v622, 0.0
    %v641 = vld [vmem:[#allocation7] sm:$0xff]
    %v642 = vld [vmem:[#allocation7 + $0x10] sm:$0xff]
    %v643 = vld [vmem:[#allocation7 + $0x20] sm:$0xff]
    %v644 = vld [vmem:[#allocation7 + $0x30] sm:$0xff]
    %v645 = vld [vmem:[#allocation7 + $0x40] sm:$0xff]
    %v646 = vld [vmem:[#allocation7 + $0x50] sm:$0xff]
    %v647 = vld [vmem:[#allocation7 + $0x60] sm:$0xff]
    %v648 = vld [vmem:[#allocation7 + $0x70] sm:$0xff]
    %v649 = vld [vmem:[#allocation7 + $0x80] sm:$0xff]
    %v650 = vld [vmem:[#allocation7 + $0x90] sm:$0xff]
    %v651 = vld [vmem:[#allocation7 + $0xa0] sm:$0xff]
    %v652 = vld [vmem:[#allocation7 + $0xb0] sm:$0xff]
    %v653 = vld [vmem:[#allocation7 + $0xc0] sm:$0xff]
    %v654 = vld [vmem:[#allocation7 + $0xd0] sm:$0xff]
    %v655 = vld [vmem:[#allocation7 + $0xe0] sm:$0xff]
    %v656 = vld [vmem:[#allocation7 + $0xf0] sm:$0xff]
    %v657 = vpack.c.bf16 %v641, %v641
    %v658 = vpack.c.bf16 %v642, %v642
    %v659 = vpack.c.bf16 %v643, %v643
    %v660 = vpack.c.bf16 %v644, %v644
    %v661 = vpack.c.bf16 %v645, %v645
    %v662 = vpack.c.bf16 %v646, %v646
    %v663 = vpack.c.bf16 %v647, %v647
    %v664 = vpack.c.bf16 %v648, %v648
    %v665 = vpack.c.bf16 %v649, %v649
    %v666 = vpack.c.bf16 %v650, %v650
    %v667 = vpack.c.bf16 %v651, %v651
    %v668 = vpack.c.bf16 %v652, %v652
    %v669 = vpack.c.bf16 %v653, %v653
    %v670 = vpack.c.bf16 %v654, %v654
    %v671 = vpack.c.bf16 %v655, %v655
    %v672 = vpack.c.bf16 %v656, %v656
    %vm673 = vcmask 130048
    %v675 = vsel %vm673, %v657, 0
    %677 = vmatprep.subr.bf16.mxu0 0
    %678 = vmatpush1.bf16.msra.mxu0 %v420
    %679 = vmatprep.subr.bf16.mxu0 0
    %680 = vmatpush1.bf16.msra.mxu0 0
    %681 = vmatprep.subr.bf16.mxu0 0
    %682 = vmatpush1.bf16.msra.mxu0 0
    %683 = vmatprep.subr.bf16.mxu0 0
    %684 = vmatpush1.bf16.msra.mxu0 0
    %685 = vmatprep.subr.bf16.mxu0 0
    %686 = vmatpush1.bf16.msra.mxu0 0
    %687 = vmatprep.subr.bf16.mxu0 0
    %688 = vmatpush1.bf16.msra.mxu0 0
    %689 = vmatprep.subr.bf16.mxu0 0
    %690 = vmatpush1.bf16.msra.mxu0 0
    %691 = vmatprep.subr.bf16.mxu0 0
    %692 = vmatpush1.bf16.msra.mxu0 0
    %693 = vmatprep.subr.bf16.mxu0 0
    %694 = vmatpush1.bf16.msra.mxu0 0
    %695 = vmatprep.subr.bf16.mxu0 0
    %696 = vmatpush1.bf16.msra.mxu0 0
    %697 = vmatprep.subr.bf16.mxu0 0
    %698 = vmatpush1.bf16.msra.mxu0 0
    %699 = vmatprep.subr.bf16.mxu0 0
    %700 = vmatpush1.bf16.msra.mxu0 0
    %701 = vmatprep.subr.bf16.mxu0 0
    %702 = vmatpush1.bf16.msra.mxu0 0
    %703 = vmatprep.subr.bf16.mxu0 0
    %704 = vmatpush1.bf16.msra.mxu0 0
    %705 = vmatprep.subr.bf16.mxu0 0
    %706 = vmatpush1.bf16.msra.mxu0 0
    %707 = vmatprep.subr.bf16.mxu0 0
    %708 = vmatpush1.bf16.msra.mxu0 0
    %709 = vmatprep.mubr.bf16.mxu0 0
    %710 = vmatmul.mubr.bf16.gmra.mrb[0].mxu0 %v675
    %v711 = vpop.f32.mrb[0].mxu0
    %v712 = vadd.f32 0.0, %v711
    %v713 = vpop.f32.mrb[0].mxu0
    %v714 = vpop.f32.mrb[0].mxu0
    %v715 = vpop.f32.mrb[0].mxu0
    %716 = vdwg.mxu0
    %v718 = vsel %vm673, %v658, 0
    %720 = vmatprep.subr.bf16.mxu0 0
    %721 = vmatpush1.bf16.msra.mxu0 %v421
    %722 = vmatprep.subr.bf16.mxu0 0
    %723 = vmatpush1.bf16.msra.mxu0 0
    %724 = vmatprep.subr.bf16.mxu0 0
    %725 = vmatpush1.bf16.msra.mxu0 0
    %726 = vmatprep.subr.bf16.mxu0 0
    %727 = vmatpush1.bf16.msra.mxu0 0
    %728 = vmatprep.subr.bf16.mxu0 0
    %729 = vmatpush1.bf16.msra.mxu0 0
    %730 = vmatprep.subr.bf16.mxu0 0
    %731 = vmatpush1.bf16.msra.mxu0 0
    %732 = vmatprep.subr.bf16.mxu0 0
    %733 = vmatpush1.bf16.msra.mxu0 0
    %734 = vmatprep.subr.bf16.mxu0 0
    %735 = vmatpush1.bf16.msra.mxu0 0
    %736 = vmatprep.subr.bf16.mxu0 0
    %737 = vmatpush1.bf16.msra.mxu0 0
    %738 = vmatprep.subr.bf16.mxu0 0
    %739 = vmatpush1.bf16.msra.mxu0 0
    %740 = vmatprep.subr.bf16.mxu0 0
    %741 = vmatpush1.bf16.msra.mxu0 0
    %742 = vmatprep.subr.bf16.mxu0 0
    %743 = vmatpush1.bf16.msra.mxu0 0
    %744 = vmatprep.subr.bf16.mxu0 0
    %745 = vmatpush1.bf16.msra.mxu0 0
    %746 = vmatprep.subr.bf16.mxu0 0
    %747 = vmatpush1.bf16.msra.mxu0 0
    %748 = vmatprep.subr.bf16.mxu0 0
    %749 = vmatpush1.bf16.msra.mxu0 0
    %750 = vmatprep.subr.bf16.mxu0 0
    %751 = vmatpush1.bf16.msra.mxu0 0
    %752 = vmatprep.mubr.bf16.mxu0 0
    %753 = vmatmul.mubr.bf16.gmra.mrb[0].mxu0 %v718
    %v754 = vpop.f32.mrb[0].mxu0
    %v755 = vadd.f32 0.0, %v754
    %v756 = vpop.f32.mrb[0].mxu0
    %v757 = vpop.f32.mrb[0].mxu0
    %v758 = vpop.f32.mrb[0].mxu0
    %759 = vdwg.mxu0
    %v761 = vsel %vm673, %v659, 0
    %763 = vmatprep.subr.bf16.mxu0 0
    %764 = vmatpush1.bf16.msra.mxu0 %v422
    %765 = vmatprep.subr.bf16.mxu0 0
    %766 = vmatpush1.bf16.msra.mxu0 0
    %767 = vmatprep.subr.bf16.mxu0 0
    %768 = vmatpush1.bf16.msra.mxu0 0
    %769 = vmatprep.subr.bf16.mxu0 0
    %770 = vmatpush1.bf16.msra.mxu0 0
    %771 = vmatprep.subr.bf16.mxu0 0
    %772 = vmatpush1.bf16.msra.mxu0 0
    %773 = vmatprep.subr.bf16.mxu0 0
    %774 = vmatpush1.bf16.msra.mxu0 0
    %775 = vmatprep.subr.bf16.mxu0 0
    %776 = vmatpush1.bf16.msra.mxu0 0
    %777 = vmatprep.subr.bf16.mxu0 0
    %778 = vmatpush1.bf16.msra.mxu0 0
    %779 = vmatprep.subr.bf16.mxu0 0
    %780 = vmatpush1.bf16.msra.mxu0 0
    %781 = vmatprep.subr.bf16.mxu0 0
    %782 = vmatpush1.bf16.msra.mxu0 0
    %783 = vmatprep.subr.bf16.mxu0 0
    %784 = vmatpush1.bf16.msra.mxu0 0
    %785 = vmatprep.subr.bf16.mxu0 0
    %786 = vmatpush1.bf16.msra.mxu0 0
    %787 = vmatprep.subr.bf16.mxu0 0
    %788 = vmatpush1.bf16.msra.mxu0 0
    %789 = vmatprep.subr.bf16.mxu0 0
    %790 = vmatpush1.bf16.msra.mxu0 0
    %791 = vmatprep.subr.bf16.mxu0 0
    %792 = vmatpush1.bf16.msra.mxu0 0
    %793 = vmatprep.subr.bf16.mxu0 0
    %794 = vmatpush1.bf16.msra.mxu0 0
    %795 = vmatprep.mubr.bf16.mxu0 0
    %796 = vmatmul.mubr.bf16.gmra.mrb[0].mxu0 %v761
    %v797 = vpop.f32.mrb[0].mxu0
    %v798 = vadd.f32 0.0, %v797
    %v799 = vpop.f32.mrb[0].mxu0
    %v800 = vpop.f32.mrb[0].mxu0
    %v801 = vpop.f32.mrb[0].mxu0
    %802 = vdwg.mxu0
    %v804 = vsel %vm673, %v660, 0
    %806 = vmatprep.subr.bf16.mxu0 0
    %807 = vmatpush1.bf16.msra.mxu0 %v423
    %808 = vmatprep.subr.bf16.mxu0 0
    %809 = vmatpush1.bf16.msra.mxu0 0
    %810 = vmatprep.subr.bf16.mxu0 0
    %811 = vmatpush1.bf16.msra.mxu0 0
    %812 = vmatprep.subr.bf16.mxu0 0
    %813 = vmatpush1.bf16.msra.mxu0 0
    %814 = vmatprep.subr.bf16.mxu0 0
    %815 = vmatpush1.bf16.msra.mxu0 0
    %816 = vmatprep.subr.bf16.mxu0 0
    %817 = vmatpush1.bf16.msra.mxu0 0
    %818 = vmatprep.subr.bf16.mxu0 0
    %819 = vmatpush1.bf16.msra.mxu0 0
    %820 = vmatprep.subr.bf16.mxu0 0
    %821 = vmatpush1.bf16.msra.mxu0 0
    %822 = vmatprep.subr.bf16.mxu0 0
    %823 = vmatpush1.bf16.msra.mxu0 0
    %824 = vmatprep.subr.bf16.mxu0 0
    %825 = vmatpush1.bf16.msra.mxu0 0
    %826 = vmatprep.subr.bf16.mxu0 0
    %827 = vmatpush1.bf16.msra.mxu0 0
    %828 = vmatprep.subr.bf16.mxu0 0
    %829 = vmatpush1.bf16.msra.mxu0 0
    %830 = vmatprep.subr.bf16.mxu0 0
    %831 = vmatpush1.bf16.msra.mxu0 0
    %832 = vmatprep.subr.bf16.mxu0 0
    %833 = vmatpush1.bf16.msra.mxu0 0
    %834 = vmatprep.subr.bf16.mxu0 0
    %835 = vmatpush1.bf16.msra.mxu0 0
    %836 = vmatprep.subr.bf16.mxu0 0
    %837 = vmatpush1.bf16.msra.mxu0 0
    %838 = vmatprep.mubr.bf16.mxu0 0
    %839 = vmatmul.mubr.bf16.gmra.mrb[0].mxu0 %v804
    %v840 = vpop.f32.mrb[0].mxu0
    %v841 = vadd.f32 0.0, %v840
    %v842 = vpop.f32.mrb[0].mxu0
    %v843 = vpop.f32.mrb[0].mxu0
    %v844 = vpop.f32.mrb[0].mxu0
    %845 = vdwg.mxu0
    %v847 = vsel %vm673, %v661, 0
    %849 = vmatprep.subr.bf16.mxu0 0
    %850 = vmatpush1.bf16.msra.mxu0 %v424
    %851 = vmatprep.subr.bf16.mxu0 0
    %852 = vmatpush1.bf16.msra.mxu0 0
    %853 = vmatprep.subr.bf16.mxu0 0
    %854 = vmatpush1.bf16.msra.mxu0 0
    %855 = vmatprep.subr.bf16.mxu0 0
    %856 = vmatpush1.bf16.msra.mxu0 0
    %857 = vmatprep.subr.bf16.mxu0 0
    %858 = vmatpush1.bf16.msra.mxu0 0
    %859 = vmatprep.subr.bf16.mxu0 0
    %860 = vmatpush1.bf16.msra.mxu0 0
    %861 = vmatprep.subr.bf16.mxu0 0
    %862 = vmatpush1.bf16.msra.mxu0 0
    %863 = vmatprep.subr.bf16.mxu0 0
    %864 = vmatpush1.bf16.msra.mxu0 0
    %865 = vmatprep.subr.bf16.mxu0 0
    %866 = vmatpush1.bf16.msra.mxu0 0
    %867 = vmatprep.subr.bf16.mxu0 0
    %868 = vmatpush1.bf16.msra.mxu0 0
    %869 = vmatprep.subr.bf16.mxu0 0
    %870 = vmatpush1.bf16.msra.mxu0 0
    %871 = vmatprep.subr.bf16.mxu0 0
    %872 = vmatpush1.bf16.msra.mxu0 0
    %873 = vmatprep.subr.bf16.mxu0 0
    %874 = vmatpush1.bf16.msra.mxu0 0
    %875 = vmatprep.subr.bf16.mxu0 0
    %876 = vmatpush1.bf16.msra.mxu0 0
    %877 = vmatprep.subr.bf16.mxu0 0
    %878 = vmatpush1.bf16.msra.mxu0 0
    %879 = vmatprep.subr.bf16.mxu0 0
    %880 = vmatpush1.bf16.msra.mxu0 0
    %881 = vmatprep.mubr.bf16.mxu0 0
    %882 = vmatmul.mubr.bf16.gmra.mrb[0].mxu0 %v847
    %v883 = vpop.f32.mrb[0].mxu0
    %v884 = vadd.f32 0.0, %v883
    %v885 = vpop.f32.mrb[0].mxu0
    %v886 = vpop.f32.mrb[0].mxu0
    %v887 = vpop.f32.mrb[0].mxu0
    %888 = vdwg.mxu0
    %v890 = vsel %vm673, %v662, 0
    %892 = vmatprep.subr.bf16.mxu0 0
    %893 = vmatpush1.bf16.msra.mxu0 %v425
    %894 = vmatprep.subr.bf16.mxu0 0
    %895 = vmatpush1.bf16.msra.mxu0 0
    %896 = vmatprep.subr.bf16.mxu0 0
    %897 = vmatpush1.bf16.msra.mxu0 0
    %898 = vmatprep.subr.bf16.mxu0 0
    %899 = vmatpush1.bf16.msra.mxu0 0
    %900 = vmatprep.subr.bf16.mxu0 0
    %901 = vmatpush1.bf16.msra.mxu0 0
    %902 = vmatprep.subr.bf16.mxu0 0
    %903 = vmatpush1.bf16.msra.mxu0 0
    %904 = vmatprep.subr.bf16.mxu0 0
    %905 = vmatpush1.bf16.msra.mxu0 0
    %906 = vmatprep.subr.bf16.mxu0 0
    %907 = vmatpush1.bf16.msra.mxu0 0
    %908 = vmatprep.subr.bf16.mxu0 0
    %909 = vmatpush1.bf16.msra.mxu0 0
    %910 = vmatprep.subr.bf16.mxu0 0
    %911 = vmatpush1.bf16.msra.mxu0 0
    %912 = vmatprep.subr.bf16.mxu0 0
    %913 = vmatpush1.bf16.msra.mxu0 0
    %914 = vmatprep.subr.bf16.mxu0 0
    %915 = vmatpush1.bf16.msra.mxu0 0
    %916 = vmatprep.subr.bf16.mxu0 0
    %917 = vmatpush1.bf16.msra.mxu0 0
    %918 = vmatprep.subr.bf16.mxu0 0
    %919 = vmatpush1.bf16.msra.mxu0 0
    %920 = vmatprep.subr.bf16.mxu0 0
    %921 = vmatpush1.bf16.msra.mxu0 0
    %922 = vmatprep.subr.bf16.mxu0 0
    %923 = vmatpush1.bf16.msra.mxu0 0
    %924 = vmatprep.mubr.bf16.mxu0 0
    %925 = vmatmul.mubr.bf16.gmra.mrb[0].mxu0 %v890
    %v926 = vpop.f32.mrb[0].mxu0
    %v927 = vadd.f32 0.0, %v926
    %v928 = vpop.f32.mrb[0].mxu0
    %v929 = vpop.f32.mrb[0].mxu0
    %v930 = vpop.f32.mrb[0].mxu0
    %931 = vdwg.mxu0
    %v933 = vsel %vm673, %v663, 0
    %935 = vmatprep.subr.bf16.mxu0 0
    %936 = vmatpush1.bf16.msra.mxu0 %v426
    %937 = vmatprep.subr.bf16.mxu0 0
    %938 = vmatpush1.bf16.msra.mxu0 0
    %939 = vmatprep.subr.bf16.mxu0 0
    %940 = vmatpush1.bf16.msra.mxu0 0
    %941 = vmatprep.subr.bf16.mxu0 0
    %942 = vmatpush1.bf16.msra.mxu0 0
    %943 = vmatprep.subr.bf16.mxu0 0
    %944 = vmatpush1.bf16.msra.mxu0 0
    %945 = vmatprep.subr.bf16.mxu0 0
    %946 = vmatpush1.bf16.msra.mxu0 0
    %947 = vmatprep.subr.bf16.mxu0 0
    %948 = vmatpush1.bf16.msra.mxu0 0
    %949 = vmatprep.subr.bf16.mxu0 0
    %950 = vmatpush1.bf16.msra.mxu0 0
    %951 = vmatprep.subr.bf16.mxu0 0
    %952 = vmatpush1.bf16.msra.mxu0 0
    %953 = vmatprep.subr.bf16.mxu0 0
    %954 = vmatpush1.bf16.msra.mxu0 0
    %955 = vmatprep.subr.bf16.mxu0 0
    %956 = vmatpush1.bf16.msra.mxu0 0
    %957 = vmatprep.subr.bf16.mxu0 0
    %958 = vmatpush1.bf16.msra.mxu0 0
    %959 = vmatprep.subr.bf16.mxu0 0
    %960 = vmatpush1.bf16.msra.mxu0 0
    %961 = vmatprep.subr.bf16.mxu0 0
    %962 = vmatpush1.bf16.msra.mxu0 0
    %963 = vmatprep.subr.bf16.mxu0 0
    %964 = vmatpush1.bf16.msra.mxu0 0
    %965 = vmatprep.subr.bf16.mxu0 0
    %966 = vmatpush1.bf16.msra.mxu0 0
    %967 = vmatprep.mubr.bf16.mxu0 0
    %968 = vmatmul.mubr.bf16.gmra.mrb[0].mxu0 %v933
    %v969 = vpop.f32.mrb[0].mxu0
    %v970 = vadd.f32 0.0, %v969
    %v971 = vpop.f32.mrb[0].mxu0
    %v972 = vpop.f32.mrb[0].mxu0
    %v973 = vpop.f32.mrb[0].mxu0
    %974 = vdwg.mxu0
    %v976 = vsel %vm673, %v664, 0
    %978 = vmatprep.subr.bf16.mxu0 0
    %979 = vmatpush1.bf16.msra.mxu0 %v427
    %980 = vmatprep.subr.bf16.mxu0 0
    %981 = vmatpush1.bf16.msra.mxu0 0
    %982 = vmatprep.subr.bf16.mxu0 0
    %983 = vmatpush1.bf16.msra.mxu0 0
    %984 = vmatprep.subr.bf16.mxu0 0
    %985 = vmatpush1.bf16.msra.mxu0 0
    %986 = vmatprep.subr.bf16.mxu0 0
    %987 = vmatpush1.bf16.msra.mxu0 0
    %988 = vmatprep.subr.bf16.mxu0 0
    %989 = vmatpush1.bf16.msra.mxu0 0
    %990 = vmatprep.subr.bf16.mxu0 0
    %991 = vmatpush1.bf16.msra.mxu0 0
    %992 = vmatprep.subr.bf16.mxu0 0
    %993 = vmatpush1.bf16.msra.mxu0 0
    %994 = vmatprep.subr.bf16.mxu0 0
    %995 = vmatpush1.bf16.msra.mxu0 0
    %996 = vmatprep.subr.bf16.mxu0 0
    %997 = vmatpush1.bf16.msra.mxu0 0
    %998 = vmatprep.subr.bf16.mxu0 0
    %999 = vmatpush1.bf16.msra.mxu0 0
    %1000 = vmatprep.subr.bf16.mxu0 0
    %1001 = vmatpush1.bf16.msra.mxu0 0
    %1002 = vmatprep.subr.bf16.mxu0 0
    %1003 = vmatpush1.bf16.msra.mxu0 0
    %1004 = vmatprep.subr.bf16.mxu0 0
    %1005 = vmatpush1.bf16.msra.mxu0 0
    %1006 = vmatprep.subr.bf16.mxu0 0
    %1007 = vmatpush1.bf16.msra.mxu0 0
    %1008 = vmatprep.subr.bf16.mxu0 0
    %1009 = vmatpush1.bf16.msra.mxu0 0
    %1010 = vmatprep.mubr.bf16.mxu0 0
    %1011 = vmatmul.mubr.bf16.gmra.mrb[0].mxu0 %v976
    %v1012 = vpop.f32.mrb[0].mxu0
    %v1013 = vadd.f32 0.0, %v1012
    %v1014 = vpop.f32.mrb[0].mxu0
    %v1015 = vpop.f32.mrb[0].mxu0
    %v1016 = vpop.f32.mrb[0].mxu0
    %1017 = vdwg.mxu0
    %v1019 = vsel %vm673, %v665, 0
    %1021 = vmatprep.subr.bf16.mxu0 0
    %1022 = vmatpush1.bf16.msra.mxu0 %v428
    %1023 = vmatprep.subr.bf16.mxu0 0
    %1024 = vmatpush1.bf16.msra.mxu0 0
    %1025 = vmatprep.subr.bf16.mxu0 0
    %1026 = vmatpush1.bf16.msra.mxu0 0
    %1027 = vmatprep.subr.bf16.mxu0 0
    %1028 = vmatpush1.bf16.msra.mxu0 0
    %1029 = vmatprep.subr.bf16.mxu0 0
    %1030 = vmatpush1.bf16.msra.mxu0 0
    %1031 = vmatprep.subr.bf16.mxu0 0
    %1032 = vmatpush1.bf16.msra.mxu0 0
    %1033 = vmatprep.subr.bf16.mxu0 0
    %1034 = vmatpush1.bf16.msra.mxu0 0
    %1035 = vmatprep.subr.bf16.mxu0 0
    %1036 = vmatpush1.bf16.msra.mxu0 0
    %1037 = vmatprep.subr.bf16.mxu0 0
    %1038 = vmatpush1.bf16.msra.mxu0 0
    %1039 = vmatprep.subr.bf16.mxu0 0
    %1040 = vmatpush1.bf16.msra.mxu0 0
    %1041 = vmatprep.subr.bf16.mxu0 0
    %1042 = vmatpush1.bf16.msra.mxu0 0
    %1043 = vmatprep.subr.bf16.mxu0 0
    %1044 = vmatpush1.bf16.msra.mxu0 0
    %1045 = vmatprep.subr.bf16.mxu0 0
    %1046 = vmatpush1.bf16.msra.mxu0 0
    %1047 = vmatprep.subr.bf16.mxu0 0
    %1048 = vmatpush1.bf16.msra.mxu0 0
    %1049 = vmatprep.subr.bf16.mxu0 0
    %1050 = vmatpush1.bf16.msra.mxu0 0
    %1051 = vmatprep.subr.bf16.mxu0 0
    %1052 = vmatpush1.bf16.msra.mxu0 0
    %1053 = vmatprep.mubr.bf16.mxu0 0
    %1054 = vmatmul.mubr.bf16.gmra.mrb[0].mxu0 %v1019
    %v1055 = vpop.f32.mrb[0].mxu0
    %v1056 = vadd.f32 0.0, %v1055
    %v1057 = vpop.f32.mrb[0].mxu0
    %v1058 = vpop.f32.mrb[0].mxu0
    %v1059 = vpop.f32.mrb[0].mxu0
    %1060 = vdwg.mxu0
    %v1062 = vsel %vm673, %v666, 0
    %1064 = vmatprep.subr.bf16.mxu0 0
    %1065 = vmatpush1.bf16.msra.mxu0 %v429
    %1066 = vmatprep.subr.bf16.mxu0 0
    %1067 = vmatpush1.bf16.msra.mxu0 0
    %1068 = vmatprep.subr.bf16.mxu0 0
    %1069 = vmatpush1.bf16.msra.mxu0 0
    %1070 = vmatprep.subr.bf16.mxu0 0
    %1071 = vmatpush1.bf16.msra.mxu0 0
    %1072 = vmatprep.subr.bf16.mxu0 0
    %1073 = vmatpush1.bf16.msra.mxu0 0
    %1074 = vmatprep.subr.bf16.mxu0 0
    %1075 = vmatpush1.bf16.msra.mxu0 0
    %1076 = vmatprep.subr.bf16.mxu0 0
    %1077 = vmatpush1.bf16.msra.mxu0 0
    %1078 = vmatprep.subr.bf16.mxu0 0
    %1079 = vmatpush1.bf16.msra.mxu0 0
    %1080 = vmatprep.subr.bf16.mxu0 0
    %1081 = vmatpush1.bf16.msra.mxu0 0
    %1082 = vmatprep.subr.bf16.mxu0 0
    %1083 = vmatpush1.bf16.msra.mxu0 0
    %1084 = vmatprep.subr.bf16.mxu0 0
    %1085 = vmatpush1.bf16.msra.mxu0 0
    %1086 = vmatprep.subr.bf16.mxu0 0
    %1087 = vmatpush1.bf16.msra.mxu0 0
    %1088 = vmatprep.subr.bf16.mxu0 0
    %1089 = vmatpush1.bf16.msra.mxu0 0
    %1090 = vmatprep.subr.bf16.mxu0 0
    %1091 = vmatpush1.bf16.msra.mxu0 0
    %1092 = vmatprep.subr.bf16.mxu0 0
    %1093 = vmatpush1.bf16.msra.mxu0 0
    %1094 = vmatprep.subr.bf16.mxu0 0
    %1095 = vmatpush1.bf16.msra.mxu0 0
    %1096 = vmatprep.mubr.bf16.mxu0 0
    %1097 = vmatmul.mubr.bf16.gmra.mrb[0].mxu0 %v1062
    %v1098 = vpop.f32.mrb[0].mxu0
    %v1099 = vadd.f32 0.0, %v1098
    %v1100 = vpop.f32.mrb[0].mxu0
    %v1101 = vpop.f32.mrb[0].mxu0
    %v1102 = vpop.f32.mrb[0].mxu0
    %1103 = vdwg.mxu0
    %v1105 = vsel %vm673, %v667, 0
    %1107 = vmatprep.subr.bf16.mxu0 0
    %1108 = vmatpush1.bf16.msra.mxu0 %v430
    %1109 = vmatprep.subr.bf16.mxu0 0
    %1110 = vmatpush1.bf16.msra.mxu0 0
    %1111 = vmatprep.subr.bf16.mxu0 0
    %1112 = vmatpush1.bf16.msra.mxu0 0
    %1113 = vmatprep.subr.bf16.mxu0 0
    %1114 = vmatpush1.bf16.msra.mxu0 0
    %1115 = vmatprep.subr.bf16.mxu0 0
    %1116 = vmatpush1.bf16.msra.mxu0 0
    %1117 = vmatprep.subr.bf16.mxu0 0
    %1118 = vmatpush1.bf16.msra.mxu0 0
    %1119 = vmatprep.subr.bf16.mxu0 0
    %1120 = vmatpush1.bf16.msra.mxu0 0
    %1121 = vmatprep.subr.bf16.mxu0 0
    %1122 = vmatpush1.bf16.msra.mxu0 0
    %1123 = vmatprep.subr.bf16.mxu0 0
    %1124 = vmatpush1.bf16.msra.mxu0 0
    %1125 = vmatprep.subr.bf16.mxu0 0
    %1126 = vmatpush1.bf16.msra.mxu0 0
    %1127 = vmatprep.subr.bf16.mxu0 0
    %1128 = vmatpush1.bf16.msra.mxu0 0
    %1129 = vmatprep.subr.bf16.mxu0 0
    %1130 = vmatpush1.bf16.msra.mxu0 0
    %1131 = vmatprep.subr.bf16.mxu0 0
    %1132 = vmatpush1.bf16.msra.mxu0 0
    %1133 = vmatprep.subr.bf16.mxu0 0
    %1134 = vmatpush1.bf16.msra.mxu0 0
    %1135 = vmatprep.subr.bf16.mxu0 0
    %1136 = vmatpush1.bf16.msra.mxu0 0
    %1137 = vmatprep.subr.bf16.mxu0 0
    %1138 = vmatpush1.bf16.msra.mxu0 0
    %1139 = vmatprep.mubr.bf16.mxu0 0
    %1140 = vmatmul.mubr.bf16.gmra.mrb[0].mxu0 %v1105
    %v1141 = vpop.f32.mrb[0].mxu0
    %v1142 = vadd.f32 0.0, %v1141
    %v1143 = vpop.f32.mrb[0].mxu0
    %v1144 = vpop.f32.mrb[0].mxu0
    %v1145 = vpop.f32.mrb[0].mxu0
    %1146 = vdwg.mxu0
    %v1148 = vsel %vm673, %v668, 0
    %1150 = vmatprep.subr.bf16.mxu0 0
    %1151 = vmatpush1.bf16.msra.mxu0 %v431
    %1152 = vmatprep.subr.bf16.mxu0 0
    %1153 = vmatpush1.bf16.msra.mxu0 0
    %1154 = vmatprep.subr.bf16.mxu0 0
    %1155 = vmatpush1.bf16.msra.mxu0 0
    %1156 = vmatprep.subr.bf16.mxu0 0
    %1157 = vmatpush1.bf16.msra.mxu0 0
    %1158 = vmatprep.subr.bf16.mxu0 0
    %1159 = vmatpush1.bf16.msra.mxu0 0
    %1160 = vmatprep.subr.bf16.mxu0 0
    %1161 = vmatpush1.bf16.msra.mxu0 0
    %1162 = vmatprep.subr.bf16.mxu0 0
    %1163 = vmatpush1.bf16.msra.mxu0 0
    %1164 = vmatprep.subr.bf16.mxu0 0
    %1165 = vmatpush1.bf16.msra.mxu0 0
    %1166 = vmatprep.subr.bf16.mxu0 0
    %1167 = vmatpush1.bf16.msra.mxu0 0
    %1168 = vmatprep.subr.bf16.mxu0 0
    %1169 = vmatpush1.bf16.msra.mxu0 0
    %1170 = vmatprep.subr.bf16.mxu0 0
    %1171 = vmatpush1.bf16.msra.mxu0 0
    %1172 = vmatprep.subr.bf16.mxu0 0
    %1173 = vmatpush1.bf16.msra.mxu0 0
    %1174 = vmatprep.subr.bf16.mxu0 0
    %1175 = vmatpush1.bf16.msra.mxu0 0
    %1176 = vmatprep.subr.bf16.mxu0 0
    %1177 = vmatpush1.bf16.msra.mxu0 0
    %1178 = vmatprep.subr.bf16.mxu0 0
    %1179 = vmatpush1.bf16.msra.mxu0 0
    %1180 = vmatprep.subr.bf16.mxu0 0
    %1181 = vmatpush1.bf16.msra.mxu0 0
    %1182 = vmatprep.mubr.bf16.mxu0 0
    %1183 = vmatmul.mubr.bf16.gmra.mrb[0].mxu0 %v1148
    %v1184 = vpop.f32.mrb[0].mxu0
    %v1185 = vadd.f32 0.0, %v1184
    %v1186 = vpop.f32.mrb[0].mxu0
    %v1187 = vpop.f32.mrb[0].mxu0
    %v1188 = vpop.f32.mrb[0].mxu0
    %1189 = vdwg.mxu0
    %v1191 = vsel %vm673, %v669, 0
    %1193 = vmatprep.subr.bf16.mxu0 0
    %1194 = vmatpush1.bf16.msra.mxu0 %v432
    %1195 = vmatprep.subr.bf16.mxu0 0
    %1196 = vmatpush1.bf16.msra.mxu0 0
    %1197 = vmatprep.subr.bf16.mxu0 0
    %1198 = vmatpush1.bf16.msra.mxu0 0
    %1199 = vmatprep.subr.bf16.mxu0 0
    %1200 = vmatpush1.bf16.msra.mxu0 0
    %1201 = vmatprep.subr.bf16.mxu0 0
    %1202 = vmatpush1.bf16.msra.mxu0 0
    %1203 = vmatprep.subr.bf16.mxu0 0
    %1204 = vmatpush1.bf16.msra.mxu0 0
    %1205 = vmatprep.subr.bf16.mxu0 0
    %1206 = vmatpush1.bf16.msra.mxu0 0
    %1207 = vmatprep.subr.bf16.mxu0 0
    %1208 = vmatpush1.bf16.msra.mxu0 0
    %1209 = vmatprep.subr.bf16.mxu0 0
    %1210 = vmatpush1.bf16.msra.mxu0 0
    %1211 = vmatprep.subr.bf16.mxu0 0
    %1212 = vmatpush1.bf16.msra.mxu0 0
    %1213 = vmatprep.subr.bf16.mxu0 0
    %1214 = vmatpush1.bf16.msra.mxu0 0
    %1215 = vmatprep.subr.bf16.mxu0 0
    %1216 = vmatpush1.bf16.msra.mxu0 0
    %1217 = vmatprep.subr.bf16.mxu0 0
    %1218 = vmatpush1.bf16.msra.mxu0 0
    %1219 = vmatprep.subr.bf16.mxu0 0
    %1220 = vmatpush1.bf16.msra.mxu0 0
    %1221 = vmatprep.subr.bf16.mxu0 0
    %1222 = vmatpush1.bf16.msra.mxu0 0
    %1223 = vmatprep.subr.bf16.mxu0 0
    %1224 = vmatpush1.bf16.msra.mxu0 0
    %1225 = vmatprep.mubr.bf16.mxu0 0
    %1226 = vmatmul.mubr.bf16.gmra.mrb[0].mxu0 %v1191
    %v1227 = vpop.f32.mrb[0].mxu0
    %v1228 = vadd.f32 0.0, %v1227
    %v1229 = vpop.f32.mrb[0].mxu0
    %v1230 = vpop.f32.mrb[0].mxu0
    %v1231 = vpop.f32.mrb[0].mxu0
    %1232 = vdwg.mxu0
    %v1234 = vsel %vm673, %v670, 0
    %1236 = vmatprep.subr.bf16.mxu0 0
    %1237 = vmatpush1.bf16.msra.mxu0 %v433
    %1238 = vmatprep.subr.bf16.mxu0 0
    %1239 = vmatpush1.bf16.msra.mxu0 0
    %1240 = vmatprep.subr.bf16.mxu0 0
    %1241 = vmatpush1.bf16.msra.mxu0 0
    %1242 = vmatprep.subr.bf16.mxu0 0
    %1243 = vmatpush1.bf16.msra.mxu0 0
    %1244 = vmatprep.subr.bf16.mxu0 0
    %1245 = vmatpush1.bf16.msra.mxu0 0
    %1246 = vmatprep.subr.bf16.mxu0 0
    %1247 = vmatpush1.bf16.msra.mxu0 0
    %1248 = vmatprep.subr.bf16.mxu0 0
    %1249 = vmatpush1.bf16.msra.mxu0 0
    %1250 = vmatprep.subr.bf16.mxu0 0
    %1251 = vmatpush1.bf16.msra.mxu0 0
    %1252 = vmatprep.subr.bf16.mxu0 0
    %1253 = vmatpush1.bf16.msra.mxu0 0
    %1254 = vmatprep.subr.bf16.mxu0 0
    %1255 = vmatpush1.bf16.msra.mxu0 0
    %1256 = vmatprep.subr.bf16.mxu0 0
    %1257 = vmatpush1.bf16.msra.mxu0 0
    %1258 = vmatprep.subr.bf16.mxu0 0
    %1259 = vmatpush1.bf16.msra.mxu0 0
    %1260 = vmatprep.subr.bf16.mxu0 0
    %1261 = vmatpush1.bf16.msra.mxu0 0
    %1262 = vmatprep.subr.bf16.mxu0 0
    %1263 = vmatpush1.bf16.msra.mxu0 0
    %1264 = vmatprep.subr.bf16.mxu0 0
    %1265 = vmatpush1.bf16.msra.mxu0 0
    %1266 = vmatprep.subr.bf16.mxu0 0
    %1267 = vmatpush1.bf16.msra.mxu0 0
    %1268 = vmatprep.mubr.bf16.mxu0 0
    %1269 = vmatmul.mubr.bf16.gmra.mrb[0].mxu0 %v1234
    %v1270 = vpop.f32.mrb[0].mxu0
    %v1271 = vadd.f32 0.0, %v1270
    %v1272 = vpop.f32.mrb[0].mxu0
    %v1273 = vpop.f32.mrb[0].mxu0
    %v1274 = vpop.f32.mrb[0].mxu0
    %1275 = vdwg.mxu0
    %v1277 = vsel %vm673, %v671, 0
    %1279 = vmatprep.subr.bf16.mxu0 0
    %1280 = vmatpush1.bf16.msra.mxu0 %v434
    %1281 = vmatprep.subr.bf16.mxu0 0
    %1282 = vmatpush1.bf16.msra.mxu0 0
    %1283 = vmatprep.subr.bf16.mxu0 0
    %1284 = vmatpush1.bf16.msra.mxu0 0
    %1285 = vmatprep.subr.bf16.mxu0 0
    %1286 = vmatpush1.bf16.msra.mxu0 0
    %1287 = vmatprep.subr.bf16.mxu0 0
    %1288 = vmatpush1.bf16.msra.mxu0 0
    %1289 = vmatprep.subr.bf16.mxu0 0
    %1290 = vmatpush1.bf16.msra.mxu0 0
    %1291 = vmatprep.subr.bf16.mxu0 0
    %1292 = vmatpush1.bf16.msra.mxu0 0
    %1293 = vmatprep.subr.bf16.mxu0 0
    %1294 = vmatpush1.bf16.msra.mxu0 0
    %1295 = vmatprep.subr.bf16.mxu0 0
    %1296 = vmatpush1.bf16.msra.mxu0 0
    %1297 = vmatprep.subr.bf16.mxu0 0
    %1298 = vmatpush1.bf16.msra.mxu0 0
    %1299 = vmatprep.subr.bf16.mxu0 0
    %1300 = vmatpush1.bf16.msra.mxu0 0
    %1301 = vmatprep.subr.bf16.mxu0 0
    %1302 = vmatpush1.bf16.msra.mxu0 0
    %1303 = vmatprep.subr.bf16.mxu0 0
    %1304 = vmatpush1.bf16.msra.mxu0 0
    %1305 = vmatprep.subr.bf16.mxu0 0
    %1306 = vmatpush1.bf16.msra.mxu0 0
    %1307 = vmatprep.subr.bf16.mxu0 0
    %1308 = vmatpush1.bf16.msra.mxu0 0
    %1309 = vmatprep.subr.bf16.mxu0 0
    %1310 = vmatpush1.bf16.msra.mxu0 0
    %1311 = vmatprep.mubr.bf16.mxu0 0
    %1312 = vmatmul.mubr.bf16.gmra.mrb[0].mxu0 %v1277
    %v1313 = vpop.f32.mrb[0].mxu0
    %v1314 = vadd.f32 0.0, %v1313
    %v1315 = vpop.f32.mrb[0].mxu0
    %v1316 = vpop.f32.mrb[0].mxu0
    %v1317 = vpop.f32.mrb[0].mxu0
    %1318 = vdwg.mxu0
    %v1320 = vsel %vm673, %v672, 0
    %1322 = vmatprep.subr.bf16.mxu0 0
    %1323 = vmatpush1.bf16.msra.mxu0 %v435
    %1324 = vmatprep.subr.bf16.mxu0 0
    %1325 = vmatpush1.bf16.msra.mxu0 0
    %1326 = vmatprep.subr.bf16.mxu0 0
    %1327 = vmatpush1.bf16.msra.mxu0 0
    %1328 = vmatprep.subr.bf16.mxu0 0
    %1329 = vmatpush1.bf16.msra.mxu0 0
    %1330 = vmatprep.subr.bf16.mxu0 0
    %1331 = vmatpush1.bf16.msra.mxu0 0
    %1332 = vmatprep.subr.bf16.mxu0 0
    %1333 = vmatpush1.bf16.msra.mxu0 0
    %1334 = vmatprep.subr.bf16.mxu0 0
    %1335 = vmatpush1.bf16.msra.mxu0 0
    %1336 = vmatprep.subr.bf16.mxu0 0
    %1337 = vmatpush1.bf16.msra.mxu0 0
    %1338 = vmatprep.subr.bf16.mxu0 0
    %1339 = vmatpush1.bf16.msra.mxu0 0
    %1340 = vmatprep.subr.bf16.mxu0 0
    %1341 = vmatpush1.bf16.msra.mxu0 0
    %1342 = vmatprep.subr.bf16.mxu0 0
    %1343 = vmatpush1.bf16.msra.mxu0 0
    %1344 = vmatprep.subr.bf16.mxu0 0
    %1345 = vmatpush1.bf16.msra.mxu0 0
    %1346 = vmatprep.subr.bf16.mxu0 0
    %1347 = vmatpush1.bf16.msra.mxu0 0
    %1348 = vmatprep.subr.bf16.mxu0 0
    %1349 = vmatpush1.bf16.msra.mxu0 0
    %1350 = vmatprep.subr.bf16.mxu0 0
    %1351 = vmatpush1.bf16.msra.mxu0 0
    %1352 = vmatprep.subr.bf16.mxu0 0
    %1353 = vmatpush1.bf16.msra.mxu0 0
    %1354 = vmatprep.mubr.bf16.mxu0 0
    %1355 = vmatmul.mubr.bf16.gmra.mrb[0].mxu0 %v1320
    %v1356 = vpop.f32.mrb[0].mxu0
    %v1357 = vadd.f32 0.0, %v1356
    %v1358 = vpop.f32.mrb[0].mxu0
    %v1359 = vpop.f32.mrb[0].mxu0
    %v1360 = vpop.f32.mrb[0].mxu0
    %1361 = vdwg.mxu0
    %v1362 = vmul.f32 %v712, %v625
    %v1363 = vmul.f32 %v755, %v626
    %v1364 = vmul.f32 %v798, %v627
    %v1365 = vmul.f32 %v841, %v628
    %v1366 = vmul.f32 %v884, %v629
    %v1367 = vmul.f32 %v927, %v630
    %v1368 = vmul.f32 %v970, %v631
    %v1369 = vmul.f32 %v1013, %v632
    %v1370 = vmul.f32 %v1056, %v633
    %v1371 = vmul.f32 %v1099, %v634
    %v1372 = vmul.f32 %v1142, %v635
    %v1373 = vmul.f32 %v1185, %v636
    %v1374 = vmul.f32 %v1228, %v637
    %v1375 = vmul.f32 %v1271, %v638
    %v1376 = vmul.f32 %v1314, %v639
    %v1377 = vmul.f32 %v1357, %v640
    %v1378 = vrot.slane %v1362, 4
    %v1379 = vadd.f32 %v1362, %v1378
    %v1380 = vrot.slane %v1379, 2
    %v1381 = vadd.f32 %v1379, %v1380
    %v1382 = vrot.slane %v1381, 1
    %v1383 = vadd.f32 %v1381, %v1382
    %v1384 = vrot.slane %v1363, 4
    %v1385 = vadd.f32 %v1363, %v1384
    %v1386 = vrot.slane %v1385, 2
    %v1387 = vadd.f32 %v1385, %v1386
    %v1388 = vrot.slane %v1387, 1
    %v1389 = vadd.f32 %v1387, %v1388
    %v1390 = vrot.slane %v1364, 4
    %v1391 = vadd.f32 %v1364, %v1390
    %v1392 = vrot.slane %v1391, 2
    %v1393 = vadd.f32 %v1391, %v1392
    %v1394 = vrot.slane %v1393, 1
    %v1395 = vadd.f32 %v1393, %v1394
    %v1396 = vrot.slane %v1365, 4
    %v1397 = vadd.f32 %v1365, %v1396
    %v1398 = vrot.slane %v1397, 2
    %v1399 = vadd.f32 %v1397, %v1398
    %v1400 = vrot.slane %v1399, 1
    %v1401 = vadd.f32 %v1399, %v1400
    %v1402 = vrot.slane %v1366, 4
    %v1403 = vadd.f32 %v1366, %v1402
    %v1404 = vrot.slane %v1403, 2
    %v1405 = vadd.f32 %v1403, %v1404
    %v1406 = vrot.slane %v1405, 1
    %v1407 = vadd.f32 %v1405, %v1406
    %v1408 = vrot.slane %v1367, 4
    %v1409 = vadd.f32 %v1367, %v1408
    %v1410 = vrot.slane %v1409, 2
    %v1411 = vadd.f32 %v1409, %v1410
    %v1412 = vrot.slane %v1411, 1
    %v1413 = vadd.f32 %v1411, %v1412
    %v1414 = vrot.slane %v1368, 4
    %v1415 = vadd.f32 %v1368, %v1414
    %v1416 = vrot.slane %v1415, 2
    %v1417 = vadd.f32 %v1415, %v1416
    %v1418 = vrot.slane %v1417, 1
    %v1419 = vadd.f32 %v1417, %v1418
    %v1420 = vrot.slane %v1369, 4
    %v1421 = vadd.f32 %v1369, %v1420
    %v1422 = vrot.slane %v1421, 2
    %v1423 = vadd.f32 %v1421, %v1422
    %v1424 = vrot.slane %v1423, 1
    %v1425 = vadd.f32 %v1423, %v1424
    %v1426 = vrot.slane %v1370, 4
    %v1427 = vadd.f32 %v1370, %v1426
    %v1428 = vrot.slane %v1427, 2
    %v1429 = vadd.f32 %v1427, %v1428
    %v1430 = vrot.slane %v1429, 1
    %v1431 = vadd.f32 %v1429, %v1430
    %v1432 = vrot.slane %v1371, 4
    %v1433 = vadd.f32 %v1371, %v1432
    %v1434 = vrot.slane %v1433, 2
    %v1435 = vadd.f32 %v1433, %v1434
    %v1436 = vrot.slane %v1435, 1
    %v1437 = vadd.f32 %v1435, %v1436
    %v1438 = vrot.slane %v1372, 4
    %v1439 = vadd.f32 %v1372, %v1438
    %v1440 = vrot.slane %v1439, 2
    %v1441 = vadd.f32 %v1439, %v1440
    %v1442 = vrot.slane %v1441, 1
    %v1443 = vadd.f32 %v1441, %v1442
    %v1444 = vrot.slane %v1373, 4
    %v1445 = vadd.f32 %v1373, %v1444
    %v1446 = vrot.slane %v1445, 2
    %v1447 = vadd.f32 %v1445, %v1446
    %v1448 = vrot.slane %v1447, 1
    %v1449 = vadd.f32 %v1447, %v1448
    %v1450 = vrot.slane %v1374, 4
    %v1451 = vadd.f32 %v1374, %v1450
    %v1452 = vrot.slane %v1451, 2
    %v1453 = vadd.f32 %v1451, %v1452
    %v1454 = vrot.slane %v1453, 1
    %v1455 = vadd.f32 %v1453, %v1454
    %v1456 = vrot.slane %v1375, 4
    %v1457 = vadd.f32 %v1375, %v1456
    %v1458 = vrot.slane %v1457, 2
    %v1459 = vadd.f32 %v1457, %v1458
    %v1460 = vrot.slane %v1459, 1
    %v1461 = vadd.f32 %v1459, %v1460
    %v1462 = vrot.slane %v1376, 4
    %v1463 = vadd.f32 %v1376, %v1462
    %v1464 = vrot.slane %v1463, 2
    %v1465 = vadd.f32 %v1463, %v1464
    %v1466 = vrot.slane %v1465, 1
    %v1467 = vadd.f32 %v1465, %v1466
    %v1468 = vrot.slane %v1377, 4
    %v1469 = vadd.f32 %v1377, %v1468
    %v1470 = vrot.slane %v1469, 2
    %v1471 = vadd.f32 %v1469, %v1470
    %v1472 = vrot.slane %v1471, 1
    %v1473 = vadd.f32 %v1471, %v1472
    %v1474 = vadd.f32 %v1383, 0.0
    %v1475 = vadd.f32 %v1389, 0.0
    %v1476 = vadd.f32 %v1395, 0.0
    %v1477 = vadd.f32 %v1401, 0.0
    %v1478 = vadd.f32 %v1407, 0.0
    %v1479 = vadd.f32 %v1413, 0.0
    %v1480 = vadd.f32 %v1419, 0.0
    %v1481 = vadd.f32 %v1425, 0.0
    %v1482 = vadd.f32 %v1431, 0.0
    %v1483 = vadd.f32 %v1437, 0.0
    %v1484 = vadd.f32 %v1443, 0.0
    %v1485 = vadd.f32 %v1449, 0.0
    %v1486 = vadd.f32 %v1455, 0.0
    %v1487 = vadd.f32 %v1461, 0.0
    %v1488 = vadd.f32 %v1467, 0.0
    %v1489 = vadd.f32 %v1473, 0.0
    %s1490 = scalar_lea.vmem [#allocation5], 8
    %v1491 = vld [vmem:[%s1490] sm:$0xff]
    %v1492 = vld [vmem:[%s1490 + $0x10] sm:$0xff]
    %v1493 = vld [vmem:[%s1490 + $0x20] sm:$0xff]
    %v1494 = vld [vmem:[%s1490 + $0x30] sm:$0xff]
    %v1495 = vld [vmem:[%s1490 + $0x40] sm:$0xff]
    %v1496 = vld [vmem:[%s1490 + $0x50] sm:$0xff]
    %v1497 = vld [vmem:[%s1490 + $0x60] sm:$0xff]
    %v1498 = vld [vmem:[%s1490 + $0x70] sm:$0xff]
    %v1499 = vld [vmem:[%s1490 + $0x80] sm:$0xff]
    %v1500 = vld [vmem:[%s1490 + $0x90] sm:$0xff]
    %v1501 = vld [vmem:[%s1490 + $0xa0] sm:$0xff]
    %v1502 = vld [vmem:[%s1490 + $0xb0] sm:$0xff]
    %v1503 = vld [vmem:[%s1490 + $0xc0] sm:$0xff]
    %v1504 = vld [vmem:[%s1490 + $0xd0] sm:$0xff]
    %v1505 = vld [vmem:[%s1490 + $0xe0] sm:$0xff]
    %v1506 = vld [vmem:[%s1490 + $0xf0] sm:$0xff]
    %v1507 = vpack.c.bf16 %v1492, %v1491
    %v1508 = vpack.c.bf16 %v1494, %v1493
    %v1509 = vpack.c.bf16 %v1496, %v1495
    %v1510 = vpack.c.bf16 %v1498, %v1497
    %v1511 = vpack.c.bf16 %v1500, %v1499
    %v1512 = vpack.c.bf16 %v1502, %v1501
    %v1513 = vpack.c.bf16 %v1504, %v1503
    %v1514 = vpack.c.bf16 %v1506, %v1505
    %1515 = vmatprep.subr.bf16.mxu0 0
    %1516 = vmatpush1.bf16.msra.mxu0 %v512
    %1517 = vmatprep.subr.bf16.mxu0 0
    %1518 = vmatpush1.bf16.msra.mxu0 %v513
    %1519 = vmatprep.subr.bf16.mxu0 0
    %1520 = vmatpush1.bf16.msra.mxu0 %v514
    %1521 = vmatprep.subr.bf16.mxu0 0
    %1522 = vmatpush1.bf16.msra.mxu0 %v515
    %1523 = vmatprep.subr.bf16.mxu0 0
    %1524 = vmatpush1.bf16.msra.mxu0 %v516
    %1525 = vmatprep.subr.bf16.mxu0 0
    %1526 = vmatpush1.bf16.msra.mxu0 %v517
    %1527 = vmatprep.subr.bf16.mxu0 0
    %1528 = vmatpush1.bf16.msra.mxu0 %v518
    %1529 = vmatprep.subr.bf16.mxu0 0
    %1530 = vmatpush1.bf16.msra.mxu0 %v519
    %1531 = vmatprep.subr.bf16.mxu0 0
    %1532 = vmatpush1.bf16.msra.mxu0 0
    %1533 = vmatprep.subr.bf16.mxu0 0
    %1534 = vmatpush1.bf16.msra.mxu0 0
    %1535 = vmatprep.subr.bf16.mxu0 0
    %1536 = vmatpush1.bf16.msra.mxu0 0
    %1537 = vmatprep.subr.bf16.mxu0 0
    %1538 = vmatpush1.bf16.msra.mxu0 0
    %1539 = vmatprep.subr.bf16.mxu0 0
    %1540 = vmatpush1.bf16.msra.mxu0 0
    %1541 = vmatprep.subr.bf16.mxu0 0
    %1542 = vmatpush1.bf16.msra.mxu0 0
    %1543 = vmatprep.subr.bf16.mxu0 0
    %1544 = vmatpush1.bf16.msra.mxu0 0
    %1545 = vmatprep.subr.bf16.mxu0 0
    %1546 = vmatpush1.bf16.msra.mxu0 0
    %1547 = vmatprep.mubr.bf16.mxu0 0
    %1548 = vmatmul.mubr.bf16.gmra.mrb[0].mxu0 %v1507
    %v1549 = vpop.f32.mrb[0].mxu0
    %v1550 = vadd.f32 %v479, %v1549
    %v1551 = vpop.f32.mrb[0].mxu0
    %v1552 = vpop.f32.mrb[0].mxu0
    %v1553 = vadd.f32 %v479, %v1552
    %v1554 = vpop.f32.mrb[0].mxu0
    %1555 = vmatprep.mubr.bf16.mxu0 0
    %1556 = vmatmul.mubr.bf16.gmra.mrb[0].mxu0 %v1508
    %v1557 = vpop.f32.mrb[0].mxu0
    %v1558 = vadd.f32 %v479, %v1557
    %v1559 = vpop.f32.mrb[0].mxu0
    %v1560 = vpop.f32.mrb[0].mxu0
    %v1561 = vadd.f32 %v479, %v1560
    %v1562 = vpop.f32.mrb[0].mxu0
    %1563 = vmatprep.mubr.bf16.mxu0 0
    %1564 = vmatmul.mubr.bf16.gmra.mrb[0].mxu0 %v1509
    %v1565 = vpop.f32.mrb[0].mxu0
    %v1566 = vadd.f32 %v479, %v1565
    %v1567 = vpop.f32.mrb[0].mxu0
    %v1568 = vpop.f32.mrb[0].mxu0
    %v1569 = vadd.f32 %v479, %v1568
    %v1570 = vpop.f32.mrb[0].mxu0
    %1571 = vmatprep.mubr.bf16.mxu0 0
    %1572 = vmatmul.mubr.bf16.gmra.mrb[0].mxu0 %v1510
    %v1573 = vpop.f32.mrb[0].mxu0
    %v1574 = vadd.f32 %v479, %v1573
    %v1575 = vpop.f32.mrb[0].mxu0
    %v1576 = vpop.f32.mrb[0].mxu0
    %v1577 = vadd.f32 %v479, %v1576
    %v1578 = vpop.f32.mrb[0].mxu0
    %1579 = vmatprep.mubr.bf16.mxu0 0
    %1580 = vmatmul.mubr.bf16.gmra.mrb[0].mxu0 %v1511
    %v1581 = vpop.f32.mrb[0].mxu0
    %v1582 = vadd.f32 %v479, %v1581
    %v1583 = vpop.f32.mrb[0].mxu0
    %v1584 = vpop.f32.mrb[0].mxu0
    %v1585 = vadd.f32 %v479, %v1584
    %v1586 = vpop.f32.mrb[0].mxu0
    %1587 = vmatprep.mubr.bf16.mxu0 0
    %1588 = vmatmul.mubr.bf16.gmra.mrb[0].mxu0 %v1512
    %v1589 = vpop.f32.mrb[0].mxu0
    %v1590 = vadd.f32 %v479, %v1589
    %v1591 = vpop.f32.mrb[0].mxu0
    %v1592 = vpop.f32.mrb[0].mxu0
    %v1593 = vadd.f32 %v479, %v1592
    %v1594 = vpop.f32.mrb[0].mxu0
    %1595 = vmatprep.mubr.bf16.mxu0 0
    %1596 = vmatmul.mubr.bf16.gmra.mrb[0].mxu0 %v1513
    %v1597 = vpop.f32.mrb[0].mxu0
    %v1598 = vadd.f32 %v479, %v1597
    %v1599 = vpop.f32.mrb[0].mxu0
    %v1600 = vpop.f32.mrb[0].mxu0
    %v1601 = vadd.f32 %v479, %v1600
    %v1602 = vpop.f32.mrb[0].mxu0
    %1603 = vmatprep.mubr.bf16.mxu0 0
    %1604 = vmatmul.mubr.bf16.gmra.mrb[0].mxu0 %v1514
    %v1605 = vpop.f32.mrb[0].mxu0
    %v1606 = vadd.f32 %v479, %v1605
    %v1607 = vpop.f32.mrb[0].mxu0
    %v1608 = vpop.f32.mrb[0].mxu0
    %v1609 = vadd.f32 %v479, %v1608
    %v1610 = vpop.f32.mrb[0].mxu0
    %1611 = vdwg.mxu0
    %v1612 = vmax.f32 %v1550, 0.0
    %v1613 = vmax.f32 %v1553, 0.0
    %v1614 = vmax.f32 %v1558, 0.0
    %v1615 = vmax.f32 %v1561, 0.0
    %v1616 = vmax.f32 %v1566, 0.0
    %v1617 = vmax.f32 %v1569, 0.0
    %v1618 = vmax.f32 %v1574, 0.0
    %v1619 = vmax.f32 %v1577, 0.0
    %v1620 = vmax.f32 %v1582, 0.0
    %v1621 = vmax.f32 %v1585, 0.0
    %v1622 = vmax.f32 %v1590, 0.0
    %v1623 = vmax.f32 %v1593, 0.0
    %v1624 = vmax.f32 %v1598, 0.0
    %v1625 = vmax.f32 %v1601, 0.0
    %v1626 = vmax.f32 %v1606, 0.0
    %v1627 = vmax.f32 %v1609, 0.0
    %s1628 = scalar_lea.vmem [#allocation7], 8
    %v1629 = vld [vmem:[%s1628] sm:$0xff]
    %v1630 = vld [vmem:[%s1628 + $0x10] sm:$0xff]
    %v1631 = vld [vmem:[%s1628 + $0x20] sm:$0xff]
    %v1632 = vld [vmem:[%s1628 + $0x30] sm:$0xff]
    %v1633 = vld [vmem:[%s1628 + $0x40] sm:$0xff]
    %v1634 = vld [vmem:[%s1628 + $0x50] sm:$0xff]
    %v1635 = vld [vmem:[%s1628 + $0x60] sm:$0xff]
    %v1636 = vld [vmem:[%s1628 + $0x70] sm:$0xff]
    %v1637 = vld [vmem:[%s1628 + $0x80] sm:$0xff]
    %v1638 = vld [vmem:[%s1628 + $0x90] sm:$0xff]
    %v1639 = vld [vmem:[%s1628 + $0xa0] sm:$0xff]
    %v1640 = vld [vmem:[%s1628 + $0xb0] sm:$0xff]
    %v1641 = vld [vmem:[%s1628 + $0xc0] sm:$0xff]
    %v1642 = vld [vmem:[%s1628 + $0xd0] sm:$0xff]
    %v1643 = vld [vmem:[%s1628 + $0xe0] sm:$0xff]
    %v1644 = vld [vmem:[%s1628 + $0xf0] sm:$0xff]
    %v1645 = vpack.c.bf16 %v1629, %v1629
    %v1646 = vpack.c.bf16 %v1630, %v1630
    %v1647 = vpack.c.bf16 %v1631, %v1631
    %v1648 = vpack.c.bf16 %v1632, %v1632
    %v1649 = vpack.c.bf16 %v1633, %v1633
    %v1650 = vpack.c.bf16 %v1634, %v1634
    %v1651 = vpack.c.bf16 %v1635, %v1635
    %v1652 = vpack.c.bf16 %v1636, %v1636
    %v1653 = vpack.c.bf16 %v1637, %v1637
    %v1654 = vpack.c.bf16 %v1638, %v1638
    %v1655 = vpack.c.bf16 %v1639, %v1639
    %v1656 = vpack.c.bf16 %v1640, %v1640
    %v1657 = vpack.c.bf16 %v1641, %v1641
    %v1658 = vpack.c.bf16 %v1642, %v1642
    %v1659 = vpack.c.bf16 %v1643, %v1643
    %v1660 = vpack.c.bf16 %v1644, %v1644
    %v1662 = vsel %vm673, %v1645, 0
    %1664 = vmatprep.subr.bf16.mxu0 0
    %1665 = vmatpush1.bf16.msra.mxu0 %v420
    %1666 = vmatprep.subr.bf16.mxu0 0
    %1667 = vmatpush1.bf16.msra.mxu0 0
    %1668 = vmatprep.subr.bf16.mxu0 0
    %1669 = vmatpush1.bf16.msra.mxu0 0
    %1670 = vmatprep.subr.bf16.mxu0 0
    %1671 = vmatpush1.bf16.msra.mxu0 0
    %1672 = vmatprep.subr.bf16.mxu0 0
    %1673 = vmatpush1.bf16.msra.mxu0 0
    %1674 = vmatprep.subr.bf16.mxu0 0
    %1675 = vmatpush1.bf16.msra.mxu0 0
    %1676 = vmatprep.subr.bf16.mxu0 0
    %1677 = vmatpush1.bf16.msra.mxu0 0
    %1678 = vmatprep.subr.bf16.mxu0 0
    %1679 = vmatpush1.bf16.msra.mxu0 0
    %1680 = vmatprep.subr.bf16.mxu0 0
    %1681 = vmatpush1.bf16.msra.mxu0 0
    %1682 = vmatprep.subr.bf16.mxu0 0
    %1683 = vmatpush1.bf16.msra.mxu0 0
    %1684 = vmatprep.subr.bf16.mxu0 0
    %1685 = vmatpush1.bf16.msra.mxu0 0
    %1686 = vmatprep.subr.bf16.mxu0 0
    %1687 = vmatpush1.bf16.msra.mxu0 0
    %1688 = vmatprep.subr.bf16.mxu0 0
    %1689 = vmatpush1.bf16.msra.mxu0 0
    %1690 = vmatprep.subr.bf16.mxu0 0
    %1691 = vmatpush1.bf16.msra.mxu0 0
    %1692 = vmatprep.subr.bf16.mxu0 0
    %1693 = vmatpush1.bf16.msra.mxu0 0
    %1694 = vmatprep.subr.bf16.mxu0 0
    %1695 = vmatpush1.bf16.msra.mxu0 0
    %1696 = vmatprep.mubr.bf16.mxu0 0
    %1697 = vmatmul.mubr.bf16.gmra.mrb[0].mxu0 %v1662
    %v1698 = vpop.f32.mrb[0].mxu0
    %v1699 = vadd.f32 0.0, %v1698
    %v1700 = vpop.f32.mrb[0].mxu0
    %v1701 = vpop.f32.mrb[0].mxu0
    %v1702 = vpop.f32.mrb[0].mxu0
    %1703 = vdwg.mxu0
    %v1705 = vsel %vm673, %v1646, 0
    %1707 = vmatprep.subr.bf16.mxu0 0
    %1708 = vmatpush1.bf16.msra.mxu0 %v421
    %1709 = vmatprep.subr.bf16.mxu0 0
    %1710 = vmatpush1.bf16.msra.mxu0 0
    %1711 = vmatprep.subr.bf16.mxu0 0
    %1712 = vmatpush1.bf16.msra.mxu0 0
    %1713 = vmatprep.subr.bf16.mxu0 0
    %1714 = vmatpush1.bf16.msra.mxu0 0
    %1715 = vmatprep.subr.bf16.mxu0 0
    %1716 = vmatpush1.bf16.msra.mxu0 0
    %1717 = vmatprep.subr.bf16.mxu0 0
    %1718 = vmatpush1.bf16.msra.mxu0 0
    %1719 = vmatprep.subr.bf16.mxu0 0
    %1720 = vmatpush1.bf16.msra.mxu0 0
    %1721 = vmatprep.subr.bf16.mxu0 0
    %1722 = vmatpush1.bf16.msra.mxu0 0
    %1723 = vmatprep.subr.bf16.mxu0 0
    %1724 = vmatpush1.bf16.msra.mxu0 0
    %1725 = vmatprep.subr.bf16.mxu0 0
    %1726 = vmatpush1.bf16.msra.mxu0 0
    %1727 = vmatprep.subr.bf16.mxu0 0
    %1728 = vmatpush1.bf16.msra.mxu0 0
    %1729 = vmatprep.subr.bf16.mxu0 0
    %1730 = vmatpush1.bf16.msra.mxu0 0
    %1731 = vmatprep.subr.bf16.mxu0 0
    %1732 = vmatpush1.bf16.msra.mxu0 0
    %1733 = vmatprep.subr.bf16.mxu0 0
    %1734 = vmatpush1.bf16.msra.mxu0 0
    %1735 = vmatprep.subr.bf16.mxu0 0
    %1736 = vmatpush1.bf16.msra.mxu0 0
    %1737 = vmatprep.subr.bf16.mxu0 0
    %1738 = vmatpush1.bf16.msra.mxu0 0
    %1739 = vmatprep.mubr.bf16.mxu0 0
    %1740 = vmatmul.mubr.bf16.gmra.mrb[0].mxu0 %v1705
    %v1741 = vpop.f32.mrb[0].mxu0
    %v1742 = vadd.f32 0.0, %v1741
    %v1743 = vpop.f32.mrb[0].mxu0
    %v1744 = vpop.f32.mrb[0].mxu0
    %v1745 = vpop.f32.mrb[0].mxu0
    %1746 = vdwg.mxu0
    %v1748 = vsel %vm673, %v1647, 0
    %1750 = vmatprep.subr.bf16.mxu0 0
    %1751 = vmatpush1.bf16.msra.mxu0 %v422
    %1752 = vmatprep.subr.bf16.mxu0 0
    %1753 = vmatpush1.bf16.msra.mxu0 0
    %1754 = vmatprep.subr.bf16.mxu0 0
    %1755 = vmatpush1.bf16.msra.mxu0 0
    %1756 = vmatprep.subr.bf16.mxu0 0
    %1757 = vmatpush1.bf16.msra.mxu0 0
    %1758 = vmatprep.subr.bf16.mxu0 0
    %1759 = vmatpush1.bf16.msra.mxu0 0
    %1760 = vmatprep.subr.bf16.mxu0 0
    %1761 = vmatpush1.bf16.msra.mxu0 0
    %1762 = vmatprep.subr.bf16.mxu0 0
    %1763 = vmatpush1.bf16.msra.mxu0 0
    %1764 = vmatprep.subr.bf16.mxu0 0
    %1765 = vmatpush1.bf16.msra.mxu0 0
    %1766 = vmatprep.subr.bf16.mxu0 0
    %1767 = vmatpush1.bf16.msra.mxu0 0
    %1768 = vmatprep.subr.bf16.mxu0 0
    %1769 = vmatpush1.bf16.msra.mxu0 0
    %1770 = vmatprep.subr.bf16.mxu0 0
    %1771 = vmatpush1.bf16.msra.mxu0 0
    %1772 = vmatprep.subr.bf16.mxu0 0
    %1773 = vmatpush1.bf16.msra.mxu0 0
    %1774 = vmatprep.subr.bf16.mxu0 0
    %1775 = vmatpush1.bf16.msra.mxu0 0
    %1776 = vmatprep.subr.bf16.mxu0 0
    %1777 = vmatpush1.bf16.msra.mxu0 0
    %1778 = vmatprep.subr.bf16.mxu0 0
    %1779 = vmatpush1.bf16.msra.mxu0 0
    %1780 = vmatprep.subr.bf16.mxu0 0
    %1781 = vmatpush1.bf16.msra.mxu0 0
    %1782 = vmatprep.mubr.bf16.mxu0 0
    %1783 = vmatmul.mubr.bf16.gmra.mrb[0].mxu0 %v1748
    %v1784 = vpop.f32.mrb[0].mxu0
    %v1785 = vadd.f32 0.0, %v1784
    %v1786 = vpop.f32.mrb[0].mxu0
    %v1787 = vpop.f32.mrb[0].mxu0
    %v1788 = vpop.f32.mrb[0].mxu0
    %1789 = vdwg.mxu0
    %v1791 = vsel %vm673, %v1648, 0
    %1793 = vmatprep.subr.bf16.mxu0 0
    %1794 = vmatpush1.bf16.msra.mxu0 %v423
    %1795 = vmatprep.subr.bf16.mxu0 0
    %1796 = vmatpush1.bf16.msra.mxu0 0
    %1797 = vmatprep.subr.bf16.mxu0 0
    %1798 = vmatpush1.bf16.msra.mxu0 0
    %1799 = vmatprep.subr.bf16.mxu0 0
    %1800 = vmatpush1.bf16.msra.mxu0 0
    %1801 = vmatprep.subr.bf16.mxu0 0
    %1802 = vmatpush1.bf16.msra.mxu0 0
    %1803 = vmatprep.subr.bf16.mxu0 0
    %1804 = vmatpush1.bf16.msra.mxu0 0
    %1805 = vmatprep.subr.bf16.mxu0 0
    %1806 = vmatpush1.bf16.msra.mxu0 0
    %1807 = vmatprep.subr.bf16.mxu0 0
    %1808 = vmatpush1.bf16.msra.mxu0 0
    %1809 = vmatprep.subr.bf16.mxu0 0
    %1810 = vmatpush1.bf16.msra.mxu0 0
    %1811 = vmatprep.subr.bf16.mxu0 0
    %1812 = vmatpush1.bf16.msra.mxu0 0
    %1813 = vmatprep.subr.bf16.mxu0 0
    %1814 = vmatpush1.bf16.msra.mxu0 0
    %1815 = vmatprep.subr.bf16.mxu0 0
    %1816 = vmatpush1.bf16.msra.mxu0 0
    %1817 = vmatprep.subr.bf16.mxu0 0
    %1818 = vmatpush1.bf16.msra.mxu0 0
    %1819 = vmatprep.subr.bf16.mxu0 0
    %1820 = vmatpush1.bf16.msra.mxu0 0
    %1821 = vmatprep.subr.bf16.mxu0 0
    %1822 = vmatpush1.bf16.msra.mxu0 0
    %1823 = vmatprep.subr.bf16.mxu0 0
    %1824 = vmatpush1.bf16.msra.mxu0 0
    %1825 = vmatprep.mubr.bf16.mxu0 0
    %1826 = vmatmul.mubr.bf16.gmra.mrb[0].mxu0 %v1791
    %v1827 = vpop.f32.mrb[0].mxu0
    %v1828 = vadd.f32 0.0, %v1827
    %v1829 = vpop.f32.mrb[0].mxu0
    %v1830 = vpop.f32.mrb[0].mxu0
    %v1831 = vpop.f32.mrb[0].mxu0
    %1832 = vdwg.mxu0
    %v1834 = vsel %vm673, %v1649, 0
    %1836 = vmatprep.subr.bf16.mxu0 0
    %1837 = vmatpush1.bf16.msra.mxu0 %v424
    %1838 = vmatprep.subr.bf16.mxu0 0
    %1839 = vmatpush1.bf16.msra.mxu0 0
    %1840 = vmatprep.subr.bf16.mxu0 0
    %1841 = vmatpush1.bf16.msra.mxu0 0
    %1842 = vmatprep.subr.bf16.mxu0 0
    %1843 = vmatpush1.bf16.msra.mxu0 0
    %1844 = vmatprep.subr.bf16.mxu0 0
    %1845 = vmatpush1.bf16.msra.mxu0 0
    %1846 = vmatprep.subr.bf16.mxu0 0
    %1847 = vmatpush1.bf16.msra.mxu0 0
    %1848 = vmatprep.subr.bf16.mxu0 0
    %1849 = vmatpush1.bf16.msra.mxu0 0
    %1850 = vmatprep.subr.bf16.mxu0 0
    %1851 = vmatpush1.bf16.msra.mxu0 0
    %1852 = vmatprep.subr.bf16.mxu0 0
    %1853 = vmatpush1.bf16.msra.mxu0 0
    %1854 = vmatprep.subr.bf16.mxu0 0
    %1855 = vmatpush1.bf16.msra.mxu0 0
    %1856 = vmatprep.subr.bf16.mxu0 0
    %1857 = vmatpush1.bf16.msra.mxu0 0
    %1858 = vmatprep.subr.bf16.mxu0 0
    %1859 = vmatpush1.bf16.msra.mxu0 0
    %1860 = vmatprep.subr.bf16.mxu0 0
    %1861 = vmatpush1.bf16.msra.mxu0 0
    %1862 = vmatprep.subr.bf16.mxu0 0
    %1863 = vmatpush1.bf16.msra.mxu0 0
    %1864 = vmatprep.subr.bf16.mxu0 0
    %1865 = vmatpush1.bf16.msra.mxu0 0
    %1866 = vmatprep.subr.bf16.mxu0 0
    %1867 = vmatpush1.bf16.msra.mxu0 0
    %1868 = vmatprep.mubr.bf16.mxu0 0
    %1869 = vmatmul.mubr.bf16.gmra.mrb[0].mxu0 %v1834
    %v1870 = vpop.f32.mrb[0].mxu0
    %v1871 = vadd.f32 0.0, %v1870
    %v1872 = vpop.f32.mrb[0].mxu0
    %v1873 = vpop.f32.mrb[0].mxu0
    %v1874 = vpop.f32.mrb[0].mxu0
    %1875 = vdwg.mxu0
    %v1877 = vsel %vm673, %v1650, 0
    %1879 = vmatprep.subr.bf16.mxu0 0
    %1880 = vmatpush1.bf16.msra.mxu0 %v425
    %1881 = vmatprep.subr.bf16.mxu0 0
    %1882 = vmatpush1.bf16.msra.mxu0 0
    %1883 = vmatprep.subr.bf16.mxu0 0
    %1884 = vmatpush1.bf16.msra.mxu0 0
    %1885 = vmatprep.subr.bf16.mxu0 0
    %1886 = vmatpush1.bf16.msra.mxu0 0
    %1887 = vmatprep.subr.bf16.mxu0 0
    %1888 = vmatpush1.bf16.msra.mxu0 0
    %1889 = vmatprep.subr.bf16.mxu0 0
    %1890 = vmatpush1.bf16.msra.mxu0 0
    %1891 = vmatprep.subr.bf16.mxu0 0
    %1892 = vmatpush1.bf16.msra.mxu0 0
    %1893 = vmatprep.subr.bf16.mxu0 0
    %1894 = vmatpush1.bf16.msra.mxu0 0
    %1895 = vmatprep.subr.bf16.mxu0 0
    %1896 = vmatpush1.bf16.msra.mxu0 0
    %1897 = vmatprep.subr.bf16.mxu0 0
    %1898 = vmatpush1.bf16.msra.mxu0 0
    %1899 = vmatprep.subr.bf16.mxu0 0
    %1900 = vmatpush1.bf16.msra.mxu0 0
    %1901 = vmatprep.subr.bf16.mxu0 0
    %1902 = vmatpush1.bf16.msra.mxu0 0
    %1903 = vmatprep.subr.bf16.mxu0 0
    %1904 = vmatpush1.bf16.msra.mxu0 0
    %1905 = vmatprep.subr.bf16.mxu0 0
    %1906 = vmatpush1.bf16.msra.mxu0 0
    %1907 = vmatprep.subr.bf16.mxu0 0
    %1908 = vmatpush1.bf16.msra.mxu0 0
    %1909 = vmatprep.subr.bf16.mxu0 0
    %1910 = vmatpush1.bf16.msra.mxu0 0
    %1911 = vmatprep.mubr.bf16.mxu0 0
    %1912 = vmatmul.mubr.bf16.gmra.mrb[0].mxu0 %v1877
    %v1913 = vpop.f32.mrb[0].mxu0
    %v1914 = vadd.f32 0.0, %v1913
    %v1915 = vpop.f32.mrb[0].mxu0
    %v1916 = vpop.f32.mrb[0].mxu0
    %v1917 = vpop.f32.mrb[0].mxu0
    %1918 = vdwg.mxu0
    %v1920 = vsel %vm673, %v1651, 0
    %1922 = vmatprep.subr.bf16.mxu0 0
    %1923 = vmatpush1.bf16.msra.mxu0 %v426
    %1924 = vmatprep.subr.bf16.mxu0 0
    %1925 = vmatpush1.bf16.msra.mxu0 0
    %1926 = vmatprep.subr.bf16.mxu0 0
    %1927 = vmatpush1.bf16.msra.mxu0 0
    %1928 = vmatprep.subr.bf16.mxu0 0
    %1929 = vmatpush1.bf16.msra.mxu0 0
    %1930 = vmatprep.subr.bf16.mxu0 0
    %1931 = vmatpush1.bf16.msra.mxu0 0
    %1932 = vmatprep.subr.bf16.mxu0 0
    %1933 = vmatpush1.bf16.msra.mxu0 0
    %1934 = vmatprep.subr.bf16.mxu0 0
    %1935 = vmatpush1.bf16.msra.mxu0 0
    %1936 = vmatprep.subr.bf16.mxu0 0
    %1937 = vmatpush1.bf16.msra.mxu0 0
    %1938 = vmatprep.subr.bf16.mxu0 0
    %1939 = vmatpush1.bf16.msra.mxu0 0
    %1940 = vmatprep.subr.bf16.mxu0 0
    %1941 = vmatpush1.bf16.msra.mxu0 0
    %1942 = vmatprep.subr.bf16.mxu0 0
    %1943 = vmatpush1.bf16.msra.mxu0 0
    %1944 = vmatprep.subr.bf16.mxu0 0
    %1945 = vmatpush1.bf16.msra.mxu0 0
    %1946 = vmatprep.subr.bf16.mxu0 0
    %1947 = vmatpush1.bf16.msra.mxu0 0
    %1948 = vmatprep.subr.bf16.mxu0 0
    %1949 = vmatpush1.bf16.msra.mxu0 0
    %1950 = vmatprep.subr.bf16.mxu0 0
    %1951 = vmatpush1.bf16.msra.mxu0 0
    %1952 = vmatprep.subr.bf16.mxu0 0
    %1953 = vmatpush1.bf16.msra.mxu0 0
    %1954 = vmatprep.mubr.bf16.mxu0 0
    %1955 = vmatmul.mubr.bf16.gmra.mrb[0].mxu0 %v1920
    %v1956 = vpop.f32.mrb[0].mxu0
    %v1957 = vadd.f32 0.0, %v1956
    %v1958 = vpop.f32.mrb[0].mxu0
    %v1959 = vpop.f32.mrb[0].mxu0
    %v1960 = vpop.f32.mrb[0].mxu0
    %1961 = vdwg.mxu0
    %v1963 = vsel %vm673, %v1652, 0
    %1965 = vmatprep.subr.bf16.mxu0 0
    %1966 = vmatpush1.bf16.msra.mxu0 %v427
    %1967 = vmatprep.subr.bf16.mxu0 0
    %1968 = vmatpush1.bf16.msra.mxu0 0
    %1969 = vmatprep.subr.bf16.mxu0 0
    %1970 = vmatpush1.bf16.msra.mxu0 0
    %1971 = vmatprep.subr.bf16.mxu0 0
    %1972 = vmatpush1.bf16.msra.mxu0 0
    %1973 = vmatprep.subr.bf16.mxu0 0
    %1974 = vmatpush1.bf16.msra.mxu0 0
    %1975 = vmatprep.subr.bf16.mxu0 0
    %1976 = vmatpush1.bf16.msra.mxu0 0
    %1977 = vmatprep.subr.bf16.mxu0 0
    %1978 = vmatpush1.bf16.msra.mxu0 0
    %1979 = vmatprep.subr.bf16.mxu0 0
    %1980 = vmatpush1.bf16.msra.mxu0 0
    %1981 = vmatprep.subr.bf16.mxu0 0
    %1982 = vmatpush1.bf16.msra.mxu0 0
    %1983 = vmatprep.subr.bf16.mxu0 0
    %1984 = vmatpush1.bf16.msra.mxu0 0
    %1985 = vmatprep.subr.bf16.mxu0 0
    %1986 = vmatpush1.bf16.msra.mxu0 0
    %1987 = vmatprep.subr.bf16.mxu0 0
    %1988 = vmatpush1.bf16.msra.mxu0 0
    %1989 = vmatprep.subr.bf16.mxu0 0
    %1990 = vmatpush1.bf16.msra.mxu0 0
    %1991 = vmatprep.subr.bf16.mxu0 0
    %1992 = vmatpush1.bf16.msra.mxu0 0
    %1993 = vmatprep.subr.bf16.mxu0 0
    %1994 = vmatpush1.bf16.msra.mxu0 0
    %1995 = vmatprep.subr.bf16.mxu0 0
    %1996 = vmatpush1.bf16.msra.mxu0 0
    %1997 = vmatprep.mubr.bf16.mxu0 0
    %1998 = vmatmul.mubr.bf16.gmra.mrb[0].mxu0 %v1963
    %v1999 = vpop.f32.mrb[0].mxu0
    %v2000 = vadd.f32 0.0, %v1999
    %v2001 = vpop.f32.mrb[0].mxu0
    %v2002 = vpop.f32.mrb[0].mxu0
    %v2003 = vpop.f32.mrb[0].mxu0
    %2004 = vdwg.mxu0
    %v2006 = vsel %vm673, %v1653, 0
    %2008 = vmatprep.subr.bf16.mxu0 0
    %2009 = vmatpush1.bf16.msra.mxu0 %v428
    %2010 = vmatprep.subr.bf16.mxu0 0
    %2011 = vmatpush1.bf16.msra.mxu0 0
    %2012 = vmatprep.subr.bf16.mxu0 0
    %2013 = vmatpush1.bf16.msra.mxu0 0
    %2014 = vmatprep.subr.bf16.mxu0 0
    %2015 = vmatpush1.bf16.msra.mxu0 0
    %2016 = vmatprep.subr.bf16.mxu0 0
    %2017 = vmatpush1.bf16.msra.mxu0 0
    %2018 = vmatprep.subr.bf16.mxu0 0
    %2019 = vmatpush1.bf16.msra.mxu0 0
    %2020 = vmatprep.subr.bf16.mxu0 0
    %2021 = vmatpush1.bf16.msra.mxu0 0
    %2022 = vmatprep.subr.bf16.mxu0 0
    %2023 = vmatpush1.bf16.msra.mxu0 0
    %2024 = vmatprep.subr.bf16.mxu0 0
    %2025 = vmatpush1.bf16.msra.mxu0 0
    %2026 = vmatprep.subr.bf16.mxu0 0
    %2027 = vmatpush1.bf16.msra.mxu0 0
    %2028 = vmatprep.subr.bf16.mxu0 0
    %2029 = vmatpush1.bf16.msra.mxu0 0
    %2030 = vmatprep.subr.bf16.mxu0 0
    %2031 = vmatpush1.bf16.msra.mxu0 0
    %2032 = vmatprep.subr.bf16.mxu0 0
    %2033 = vmatpush1.bf16.msra.mxu0 0
    %2034 = vmatprep.subr.bf16.mxu0 0
    %2035 = vmatpush1.bf16.msra.mxu0 0
    %2036 = vmatprep.subr.bf16.mxu0 0
    %2037 = vmatpush1.bf16.msra.mxu0 0
    %2038 = vmatprep.subr.bf16.mxu0 0
    %2039 = vmatpush1.bf16.msra.mxu0 0
    %2040 = vmatprep.mubr.bf16.mxu0 0
    %2041 = vmatmul.mubr.bf16.gmra.mrb[0].mxu0 %v2006
    %v2042 = vpop.f32.mrb[0].mxu0
    %v2043 = vadd.f32 0.0, %v2042
    %v2044 = vpop.f32.mrb[0].mxu0
    %v2045 = vpop.f32.mrb[0].mxu0
    %v2046 = vpop.f32.mrb[0].mxu0
    %2047 = vdwg.mxu0
    %v2049 = vsel %vm673, %v1654, 0
    %2051 = vmatprep.subr.bf16.mxu0 0
    %2052 = vmatpush1.bf16.msra.mxu0 %v429
    %2053 = vmatprep.subr.bf16.mxu0 0
    %2054 = vmatpush1.bf16.msra.mxu0 0
    %2055 = vmatprep.subr.bf16.mxu0 0
    %2056 = vmatpush1.bf16.msra.mxu0 0
    %2057 = vmatprep.subr.bf16.mxu0 0
    %2058 = vmatpush1.bf16.msra.mxu0 0
    %2059 = vmatprep.subr.bf16.mxu0 0
    %2060 = vmatpush1.bf16.msra.mxu0 0
    %2061 = vmatprep.subr.bf16.mxu0 0
    %2062 = vmatpush1.bf16.msra.mxu0 0
    %2063 = vmatprep.subr.bf16.mxu0 0
    %2064 = vmatpush1.bf16.msra.mxu0 0
    %2065 = vmatprep.subr.bf16.mxu0 0
    %2066 = vmatpush1.bf16.msra.mxu0 0
    %2067 = vmatprep.subr.bf16.mxu0 0
    %2068 = vmatpush1.bf16.msra.mxu0 0
    %2069 = vmatprep.subr.bf16.mxu0 0
    %2070 = vmatpush1.bf16.msra.mxu0 0
    %2071 = vmatprep.subr.bf16.mxu0 0
    %2072 = vmatpush1.bf16.msra.mxu0 0
    %2073 = vmatprep.subr.bf16.mxu0 0
    %2074 = vmatpush1.bf16.msra.mxu0 0
    %2075 = vmatprep.subr.bf16.mxu0 0
    %2076 = vmatpush1.bf16.msra.mxu0 0
    %2077 = vmatprep.subr.bf16.mxu0 0
    %2078 = vmatpush1.bf16.msra.mxu0 0
    %2079 = vmatprep.subr.bf16.mxu0 0
    %2080 = vmatpush1.bf16.msra.mxu0 0
    %2081 = vmatprep.subr.bf16.mxu0 0
    %2082 = vmatpush1.bf16.msra.mxu0 0
    %2083 = vmatprep.mubr.bf16.mxu0 0
    %2084 = vmatmul.mubr.bf16.gmra.mrb[0].mxu0 %v2049
    %v2085 = vpop.f32.mrb[0].mxu0
    %v2086 = vadd.f32 0.0, %v2085
    %v2087 = vpop.f32.mrb[0].mxu0
    %v2088 = vpop.f32.mrb[0].mxu0
    %v2089 = vpop.f32.mrb[0].mxu0
    %2090 = vdwg.mxu0
    %v2092 = vsel %vm673, %v1655, 0
    %2094 = vmatprep.subr.bf16.mxu0 0
    %2095 = vmatpush1.bf16.msra.mxu0 %v430
    %2096 = vmatprep.subr.bf16.mxu0 0
    %2097 = vmatpush1.bf16.msra.mxu0 0
    %2098 = vmatprep.subr.bf16.mxu0 0
    %2099 = vmatpush1.bf16.msra.mxu0 0
    %2100 = vmatprep.subr.bf16.mxu0 0
    %2101 = vmatpush1.bf16.msra.mxu0 0
    %2102 = vmatprep.subr.bf16.mxu0 0
    %2103 = vmatpush1.bf16.msra.mxu0 0
    %2104 = vmatprep.subr.bf16.mxu0 0
    %2105 = vmatpush1.bf16.msra.mxu0 0
    %2106 = vmatprep.subr.bf16.mxu0 0
    %2107 = vmatpush1.bf16.msra.mxu0 0
    %2108 = vmatprep.subr.bf16.mxu0 0
    %2109 = vmatpush1.bf16.msra.mxu0 0
    %2110 = vmatprep.subr.bf16.mxu0 0
    %2111 = vmatpush1.bf16.msra.mxu0 0
    %2112 = vmatprep.subr.bf16.mxu0 0
    %2113 = vmatpush1.bf16.msra.mxu0 0
    %2114 = vmatprep.subr.bf16.mxu0 0
    %2115 = vmatpush1.bf16.msra.mxu0 0
    %2116 = vmatprep.subr.bf16.mxu0 0
    %2117 = vmatpush1.bf16.msra.mxu0 0
    %2118 = vmatprep.subr.bf16.mxu0 0
    %2119 = vmatpush1.bf16.msra.mxu0 0
    %2120 = vmatprep.subr.bf16.mxu0 0
    %2121 = vmatpush1.bf16.msra.mxu0 0
    %2122 = vmatprep.subr.bf16.mxu0 0
    %2123 = vmatpush1.bf16.msra.mxu0 0
    %2124 = vmatprep.subr.bf16.mxu0 0
    %2125 = vmatpush1.bf16.msra.mxu0 0
    %2126 = vmatprep.mubr.bf16.mxu0 0
    %2127 = vmatmul.mubr.bf16.gmra.mrb[0].mxu0 %v2092
    %v2128 = vpop.f32.mrb[0].mxu0
    %v2129 = vadd.f32 0.0, %v2128
    %v2130 = vpop.f32.mrb[0].mxu0
    %v2131 = vpop.f32.mrb[0].mxu0
    %v2132 = vpop.f32.mrb[0].mxu0
    %2133 = vdwg.mxu0
    %v2135 = vsel %vm673, %v1656, 0
    %2137 = vmatprep.subr.bf16.mxu0 0
    %2138 = vmatpush1.bf16.msra.mxu0 %v431
    %2139 = vmatprep.subr.bf16.mxu0 0
    %2140 = vmatpush1.bf16.msra.mxu0 0
    %2141 = vmatprep.subr.bf16.mxu0 0
    %2142 = vmatpush1.bf16.msra.mxu0 0
    %2143 = vmatprep.subr.bf16.mxu0 0
    %2144 = vmatpush1.bf16.msra.mxu0 0
    %2145 = vmatprep.subr.bf16.mxu0 0
    %2146 = vmatpush1.bf16.msra.mxu0 0
    %2147 = vmatprep.subr.bf16.mxu0 0
    %2148 = vmatpush1.bf16.msra.mxu0 0
    %2149 = vmatprep.subr.bf16.mxu0 0
    %2150 = vmatpush1.bf16.msra.mxu0 0
    %2151 = vmatprep.subr.bf16.mxu0 0
    %2152 = vmatpush1.bf16.msra.mxu0 0
    %2153 = vmatprep.subr.bf16.mxu0 0
    %2154 = vmatpush1.bf16.msra.mxu0 0
    %2155 = vmatprep.subr.bf16.mxu0 0
    %2156 = vmatpush1.bf16.msra.mxu0 0
    %2157 = vmatprep.subr.bf16.mxu0 0
    %2158 = vmatpush1.bf16.msra.mxu0 0
    %2159 = vmatprep.subr.bf16.mxu0 0
    %2160 = vmatpush1.bf16.msra.mxu0 0
    %2161 = vmatprep.subr.bf16.mxu0 0
    %2162 = vmatpush1.bf16.msra.mxu0 0
    %2163 = vmatprep.subr.bf16.mxu0 0
    %2164 = vmatpush1.bf16.msra.mxu0 0
    %2165 = vmatprep.subr.bf16.mxu0 0
    %2166 = vmatpush1.bf16.msra.mxu0 0
    %2167 = vmatprep.subr.bf16.mxu0 0
    %2168 = vmatpush1.bf16.msra.mxu0 0
    %2169 = vmatprep.mubr.bf16.mxu0 0
    %2170 = vmatmul.mubr.bf16.gmra.mrb[0].mxu0 %v2135
    %v2171 = vpop.f32.mrb[0].mxu0
    %v2172 = vadd.f32 0.0, %v2171
    %v2173 = vpop.f32.mrb[0].mxu0
    %v2174 = vpop.f32.mrb[0].mxu0
    %v2175 = vpop.f32.mrb[0].mxu0
    %2176 = vdwg.mxu0
    %v2178 = vsel %vm673, %v1657, 0
    %2180 = vmatprep.subr.bf16.mxu0 0
    %2181 = vmatpush1.bf16.msra.mxu0 %v432
    %2182 = vmatprep.subr.bf16.mxu0 0
    %2183 = vmatpush1.bf16.msra.mxu0 0
    %2184 = vmatprep.subr.bf16.mxu0 0
    %2185 = vmatpush1.bf16.msra.mxu0 0
    %2186 = vmatprep.subr.bf16.mxu0 0
    %2187 = vmatpush1.bf16.msra.mxu0 0
    %2188 = vmatprep.subr.bf16.mxu0 0
    %2189 = vmatpush1.bf16.msra.mxu0 0
    %2190 = vmatprep.subr.bf16.mxu0 0
    %2191 = vmatpush1.bf16.msra.mxu0 0
    %2192 = vmatprep.subr.bf16.mxu0 0
    %2193 = vmatpush1.bf16.msra.mxu0 0
    %2194 = vmatprep.subr.bf16.mxu0 0
    %2195 = vmatpush1.bf16.msra.mxu0 0
    %2196 = vmatprep.subr.bf16.mxu0 0
    %2197 = vmatpush1.bf16.msra.mxu0 0
    %2198 = vmatprep.subr.bf16.mxu0 0
    %2199 = vmatpush1.bf16.msra.mxu0 0
    %2200 = vmatprep.subr.bf16.mxu0 0
    %2201 = vmatpush1.bf16.msra.mxu0 0
    %2202 = vmatprep.subr.bf16.mxu0 0
    %2203 = vmatpush1.bf16.msra.mxu0 0
    %2204 = vmatprep.subr.bf16.mxu0 0
    %2205 = vmatpush1.bf16.msra.mxu0 0
    %2206 = vmatprep.subr.bf16.mxu0 0
    %2207 = vmatpush1.bf16.msra.mxu0 0
    %2208 = vmatprep.subr.bf16.mxu0 0
    %2209 = vmatpush1.bf16.msra.mxu0 0
    %2210 = vmatprep.subr.bf16.mxu0 0
    %2211 = vmatpush1.bf16.msra.mxu0 0
    %2212 = vmatprep.mubr.bf16.mxu0 0
    %2213 = vmatmul.mubr.bf16.gmra.mrb[0].mxu0 %v2178
    %v2214 = vpop.f32.mrb[0].mxu0
    %v2215 = vadd.f32 0.0, %v2214
    %v2216 = vpop.f32.mrb[0].mxu0
    %v2217 = vpop.f32.mrb[0].mxu0
    %v2218 = vpop.f32.mrb[0].mxu0
    %2219 = vdwg.mxu0
    %v2221 = vsel %vm673, %v1658, 0
    %2223 = vmatprep.subr.bf16.mxu0 0
    %2224 = vmatpush1.bf16.msra.mxu0 %v433
    %2225 = vmatprep.subr.bf16.mxu0 0
    %2226 = vmatpush1.bf16.msra.mxu0 0
    %2227 = vmatprep.subr.bf16.mxu0 0
    %2228 = vmatpush1.bf16.msra.mxu0 0
    %2229 = vmatprep.subr.bf16.mxu0 0
    %2230 = vmatpush1.bf16.msra.mxu0 0
    %2231 = vmatprep.subr.bf16.mxu0 0
    %2232 = vmatpush1.bf16.msra.mxu0 0
    %2233 = vmatprep.subr.bf16.mxu0 0
    %2234 = vmatpush1.bf16.msra.mxu0 0
    %2235 = vmatprep.subr.bf16.mxu0 0
    %2236 = vmatpush1.bf16.msra.mxu0 0
    %2237 = vmatprep.subr.bf16.mxu0 0
    %2238 = vmatpush1.bf16.msra.mxu0 0
    %2239 = vmatprep.subr.bf16.mxu0 0
    %2240 = vmatpush1.bf16.msra.mxu0 0
    %2241 = vmatprep.subr.bf16.mxu0 0
    %2242 = vmatpush1.bf16.msra.mxu0 0
    %2243 = vmatprep.subr.bf16.mxu0 0
    %2244 = vmatpush1.bf16.msra.mxu0 0
    %2245 = vmatprep.subr.bf16.mxu0 0
    %2246 = vmatpush1.bf16.msra.mxu0 0
    %2247 = vmatprep.subr.bf16.mxu0 0
    %2248 = vmatpush1.bf16.msra.mxu0 0
    %2249 = vmatprep.subr.bf16.mxu0 0
    %2250 = vmatpush1.bf16.msra.mxu0 0
    %2251 = vmatprep.subr.bf16.mxu0 0
    %2252 = vmatpush1.bf16.msra.mxu0 0
    %2253 = vmatprep.subr.bf16.mxu0 0
    %2254 = vmatpush1.bf16.msra.mxu0 0
    %2255 = vmatprep.mubr.bf16.mxu0 0
    %2256 = vmatmul.mubr.bf16.gmra.mrb[0].mxu0 %v2221
    %v2257 = vpop.f32.mrb[0].mxu0
    %v2258 = vadd.f32 0.0, %v2257
    %v2259 = vpop.f32.mrb[0].mxu0
    %v2260 = vpop.f32.mrb[0].mxu0
    %v2261 = vpop.f32.mrb[0].mxu0
    %2262 = vdwg.mxu0
    %v2264 = vsel %vm673, %v1659, 0
    %2266 = vmatprep.subr.bf16.mxu0 0
    %2267 = vmatpush1.bf16.msra.mxu0 %v434
    %2268 = vmatprep.subr.bf16.mxu0 0
    %2269 = vmatpush1.bf16.msra.mxu0 0
    %2270 = vmatprep.subr.bf16.mxu0 0
    %2271 = vmatpush1.bf16.msra.mxu0 0
    %2272 = vmatprep.subr.bf16.mxu0 0
    %2273 = vmatpush1.bf16.msra.mxu0 0
    %2274 = vmatprep.subr.bf16.mxu0 0
    %2275 = vmatpush1.bf16.msra.mxu0 0
    %2276 = vmatprep.subr.bf16.mxu0 0
    %2277 = vmatpush1.bf16.msra.mxu0 0
    %2278 = vmatprep.subr.bf16.mxu0 0
    %2279 = vmatpush1.bf16.msra.mxu0 0
    %2280 = vmatprep.subr.bf16.mxu0 0
    %2281 = vmatpush1.bf16.msra.mxu0 0
    %2282 = vmatprep.subr.bf16.mxu0 0
    %2283 = vmatpush1.bf16.msra.mxu0 0
    %2284 = vmatprep.subr.bf16.mxu0 0
    %2285 = vmatpush1.bf16.msra.mxu0 0
    %2286 = vmatprep.subr.bf16.mxu0 0
    %2287 = vmatpush1.bf16.msra.mxu0 0
    %2288 = vmatprep.subr.bf16.mxu0 0
    %2289 = vmatpush1.bf16.msra.mxu0 0
    %2290 = vmatprep.subr.bf16.mxu0 0
    %2291 = vmatpush1.bf16.msra.mxu0 0
    %2292 = vmatprep.subr.bf16.mxu0 0
    %2293 = vmatpush1.bf16.msra.mxu0 0
    %2294 = vmatprep.subr.bf16.mxu0 0
    %2295 = vmatpush1.bf16.msra.mxu0 0
    %2296 = vmatprep.subr.bf16.mxu0 0
    %2297 = vmatpush1.bf16.msra.mxu0 0
    %2298 = vmatprep.mubr.bf16.mxu0 0
    %2299 = vmatmul.mubr.bf16.gmra.mrb[0].mxu0 %v2264
    %v2300 = vpop.f32.mrb[0].mxu0
    %v2301 = vadd.f32 0.0, %v2300
    %v2302 = vpop.f32.mrb[0].mxu0
    %v2303 = vpop.f32.mrb[0].mxu0
    %v2304 = vpop.f32.mrb[0].mxu0
    %2305 = vdwg.mxu0
    %v2307 = vsel %vm673, %v1660, 0
    %2309 = vmatprep.subr.bf16.mxu0 0
    %2310 = vmatpush1.bf16.msra.mxu0 %v435
    %2311 = vmatprep.subr.bf16.mxu0 0
    %2312 = vmatpush1.bf16.msra.mxu0 0
    %2313 = vmatprep.subr.bf16.mxu0 0
    %2314 = vmatpush1.bf16.msra.mxu0 0
    %2315 = vmatprep.subr.bf16.mxu0 0
    %2316 = vmatpush1.bf16.msra.mxu0 0
    %2317 = vmatprep.subr.bf16.mxu0 0
    %2318 = vmatpush1.bf16.msra.mxu0 0
    %2319 = vmatprep.subr.bf16.mxu0 0
    %2320 = vmatpush1.bf16.msra.mxu0 0
    %2321 = vmatprep.subr.bf16.mxu0 0
    %2322 = vmatpush1.bf16.msra.mxu0 0
    %2323 = vmatprep.subr.bf16.mxu0 0
    %2324 = vmatpush1.bf16.msra.mxu0 0
    %2325 = vmatprep.subr.bf16.mxu0 0
    %2326 = vmatpush1.bf16.msra.mxu0 0
    %2327 = vmatprep.subr.bf16.mxu0 0
    %2328 = vmatpush1.bf16.msra.mxu0 0
    %2329 = vmatprep.subr.bf16.mxu0 0
    %2330 = vmatpush1.bf16.msra.mxu0 0
    %2331 = vmatprep.subr.bf16.mxu0 0
    %2332 = vmatpush1.bf16.msra.mxu0 0
    %2333 = vmatprep.subr.bf16.mxu0 0
    %2334 = vmatpush1.bf16.msra.mxu0 0
    %2335 = vmatprep.subr.bf16.mxu0 0
    %2336 = vmatpush1.bf16.msra.mxu0 0
    %2337 = vmatprep.subr.bf16.mxu0 0
    %2338 = vmatpush1.bf16.msra.mxu0 0
    %2339 = vmatprep.subr.bf16.mxu0 0
    %2340 = vmatpush1.bf16.msra.mxu0 0
    %2341 = vmatprep.mubr.bf16.mxu0 0
    %2342 = vmatmul.mubr.bf16.gmra.mrb[0].mxu0 %v2307
    %v2343 = vpop.f32.mrb[0].mxu0
    %v2344 = vadd.f32 0.0, %v2343
    %v2345 = vpop.f32.mrb[0].mxu0
    %v2346 = vpop.f32.mrb[0].mxu0
    %v2347 = vpop.f32.mrb[0].mxu0
    %2348 = vdwg.mxu0
    %v2349 = vmul.f32 %v1699, %v1612
    %v2350 = vmul.f32 %v1742, %v1613
    %v2351 = vmul.f32 %v1785, %v1614
    %v2352 = vmul.f32 %v1828, %v1615
    %v2353 = vmul.f32 %v1871, %v1616
    %v2354 = vmul.f32 %v1914, %v1617
    %v2355 = vmul.f32 %v1957, %v1618
    %v2356 = vmul.f32 %v2000, %v1619
    %v2357 = vmul.f32 %v2043, %v1620
    %v2358 = vmul.f32 %v2086, %v1621
    %v2359 = vmul.f32 %v2129, %v1622
    %v2360 = vmul.f32 %v2172, %v1623
    %v2361 = vmul.f32 %v2215, %v1624
    %v2362 = vmul.f32 %v2258, %v1625
    %v2363 = vmul.f32 %v2301, %v1626
    %v2364 = vmul.f32 %v2344, %v1627
    %v2365 = vrot.slane %v2349, 4
    %v2366 = vadd.f32 %v2349, %v2365
    %v2367 = vrot.slane %v2366, 2
    %v2368 = vadd.f32 %v2366, %v2367
    %v2369 = vrot.slane %v2368, 1
    %v2370 = vadd.f32 %v2368, %v2369
    %v2371 = vrot.slane %v2350, 4
    %v2372 = vadd.f32 %v2350, %v2371
    %v2373 = vrot.slane %v2372, 2
    %v2374 = vadd.f32 %v2372, %v2373
    %v2375 = vrot.slane %v2374, 1
    %v2376 = vadd.f32 %v2374, %v2375
    %v2377 = vrot.slane %v2351, 4
    %v2378 = vadd.f32 %v2351, %v2377
    %v2379 = vrot.slane %v2378, 2
    %v2380 = vadd.f32 %v2378, %v2379
    %v2381 = vrot.slane %v2380, 1
    %v2382 = vadd.f32 %v2380, %v2381
    %v2383 = vrot.slane %v2352, 4
    %v2384 = vadd.f32 %v2352, %v2383
    %v2385 = vrot.slane %v2384, 2
    %v2386 = vadd.f32 %v2384, %v2385
    %v2387 = vrot.slane %v2386, 1
    %v2388 = vadd.f32 %v2386, %v2387
    %v2389 = vrot.slane %v2353, 4
    %v2390 = vadd.f32 %v2353, %v2389
    %v2391 = vrot.slane %v2390, 2
    %v2392 = vadd.f32 %v2390, %v2391
    %v2393 = vrot.slane %v2392, 1
    %v2394 = vadd.f32 %v2392, %v2393
    %v2395 = vrot.slane %v2354, 4
    %v2396 = vadd.f32 %v2354, %v2395
    %v2397 = vrot.slane %v2396, 2
    %v2398 = vadd.f32 %v2396, %v2397
    %v2399 = vrot.slane %v2398, 1
    %v2400 = vadd.f32 %v2398, %v2399
    %v2401 = vrot.slane %v2355, 4
    %v2402 = vadd.f32 %v2355, %v2401
    %v2403 = vrot.slane %v2402, 2
    %v2404 = vadd.f32 %v2402, %v2403
    %v2405 = vrot.slane %v2404, 1
    %v2406 = vadd.f32 %v2404, %v2405
    %v2407 = vrot.slane %v2356, 4
    %v2408 = vadd.f32 %v2356, %v2407
    %v2409 = vrot.slane %v2408, 2
    %v2410 = vadd.f32 %v2408, %v2409
    %v2411 = vrot.slane %v2410, 1
    %v2412 = vadd.f32 %v2410, %v2411
    %v2413 = vrot.slane %v2357, 4
    %v2414 = vadd.f32 %v2357, %v2413
    %v2415 = vrot.slane %v2414, 2
    %v2416 = vadd.f32 %v2414, %v2415
    %v2417 = vrot.slane %v2416, 1
    %v2418 = vadd.f32 %v2416, %v2417
    %v2419 = vrot.slane %v2358, 4
    %v2420 = vadd.f32 %v2358, %v2419
    %v2421 = vrot.slane %v2420, 2
    %v2422 = vadd.f32 %v2420, %v2421
    %v2423 = vrot.slane %v2422, 1
    %v2424 = vadd.f32 %v2422, %v2423
    %v2425 = vrot.slane %v2359, 4
    %v2426 = vadd.f32 %v2359, %v2425
    %v2427 = vrot.slane %v2426, 2
    %v2428 = vadd.f32 %v2426, %v2427
    %v2429 = vrot.slane %v2428, 1
    %v2430 = vadd.f32 %v2428, %v2429
    %v2431 = vrot.slane %v2360, 4
    %v2432 = vadd.f32 %v2360, %v2431
    %v2433 = vrot.slane %v2432, 2
    %v2434 = vadd.f32 %v2432, %v2433
    %v2435 = vrot.slane %v2434, 1
    %v2436 = vadd.f32 %v2434, %v2435
    %v2437 = vrot.slane %v2361, 4
    %v2438 = vadd.f32 %v2361, %v2437
    %v2439 = vrot.slane %v2438, 2
    %v2440 = vadd.f32 %v2438, %v2439
    %v2441 = vrot.slane %v2440, 1
    %v2442 = vadd.f32 %v2440, %v2441
    %v2443 = vrot.slane %v2362, 4
    %v2444 = vadd.f32 %v2362, %v2443
    %v2445 = vrot.slane %v2444, 2
    %v2446 = vadd.f32 %v2444, %v2445
    %v2447 = vrot.slane %v2446, 1
    %v2448 = vadd.f32 %v2446, %v2447
    %v2449 = vrot.slane %v2363, 4
    %v2450 = vadd.f32 %v2363, %v2449
    %v2451 = vrot.slane %v2450, 2
    %v2452 = vadd.f32 %v2450, %v2451
    %v2453 = vrot.slane %v2452, 1
    %v2454 = vadd.f32 %v2452, %v2453
    %v2455 = vrot.slane %v2364, 4
    %v2456 = vadd.f32 %v2364, %v2455
    %v2457 = vrot.slane %v2456, 2
    %v2458 = vadd.f32 %v2456, %v2457
    %v2459 = vrot.slane %v2458, 1
    %v2460 = vadd.f32 %v2458, %v2459
    %v2461 = vadd.f32 %v1474, %v2370
    %v2462 = vadd.f32 %v1475, %v2376
    %v2463 = vadd.f32 %v1476, %v2382
    %v2464 = vadd.f32 %v1477, %v2388
    %v2465 = vadd.f32 %v1478, %v2394
    %v2466 = vadd.f32 %v1479, %v2400
    %v2467 = vadd.f32 %v1480, %v2406
    %v2468 = vadd.f32 %v1481, %v2412
    %v2469 = vadd.f32 %v1482, %v2418
    %v2470 = vadd.f32 %v1483, %v2424
    %v2471 = vadd.f32 %v1484, %v2430
    %v2472 = vadd.f32 %v1485, %v2436
    %v2473 = vadd.f32 %v1486, %v2442
    %v2474 = vadd.f32 %v1487, %v2448
    %v2475 = vadd.f32 %v1488, %v2454
    %v2476 = vadd.f32 %v1489, %v2460
    %v2477 = vpack.c.bf16 %v2461, %v2461
    %v2478 = vpack.c.bf16 %v2462, %v2462
    %v2479 = vpack.c.bf16 %v2463, %v2463
    %v2480 = vpack.c.bf16 %v2464, %v2464
    %v2481 = vpack.c.bf16 %v2465, %v2465
    %v2482 = vpack.c.bf16 %v2466, %v2466
    %v2483 = vpack.c.bf16 %v2467, %v2467
    %v2484 = vpack.c.bf16 %v2468, %v2468
    %v2485 = vpack.c.bf16 %v2469, %v2469
    %v2486 = vpack.c.bf16 %v2470, %v2470
    %v2487 = vpack.c.bf16 %v2471, %v2471
    %v2488 = vpack.c.bf16 %v2472, %v2472
    %v2489 = vpack.c.bf16 %v2473, %v2473
    %v2490 = vpack.c.bf16 %v2474, %v2474
    %v2491 = vpack.c.bf16 %v2475, %v2475
    %v2492 = vpack.c.bf16 %v2476, %v2476
    %v2493 = vld [vmem:[#allocation11] sm:$0xf]
    %v2494 = vld [vmem:[#allocation11 + $0x4] sm:$0xf]
    %v2495 = vld [vmem:[#allocation11 + $0x8] sm:$0xf]
    %v2496 = vld [vmem:[#allocation11 + $0xc] sm:$0xf]
    %v2497 = vld [vmem:[#allocation11 + $0x10] sm:$0xf]
    %v2498 = vld [vmem:[#allocation11 + $0x14] sm:$0xf]
    %v2499 = vld [vmem:[#allocation11 + $0x18] sm:$0xf]
    %v2500 = vld [vmem:[#allocation11 + $0x1c] sm:$0xf]
    %v2501 = vld [vmem:[#allocation11 + $0x20] sm:$0xf]
    %v2502 = vld [vmem:[#allocation11 + $0x24] sm:$0xf]
    %v2503 = vld [vmem:[#allocation11 + $0x28] sm:$0xf]
    %v2504 = vld [vmem:[#allocation11 + $0x2c] sm:$0xf]
    %v2505 = vld [vmem:[#allocation11 + $0x30] sm:$0xf]
    %v2506 = vld [vmem:[#allocation11 + $0x34] sm:$0xf]
    %v2507 = vld [vmem:[#allocation11 + $0x38] sm:$0xf]
    %v2508 = vld [vmem:[#allocation11 + $0x3c] sm:$0xf]
    %v2509 = vlaneseq
    %v2510 = vshrl.u32 %v2509, 7
    %v2511 = vsub.s32 2, %v2510
    %v2512 = vrot.slane %v110, %v2511
    %v2529 = vunpack.c.l.b16 %v2477
    %v2530 = vunpack.c.l.b16 %v2478
    %v2531 = vunpack.c.l.b16 %v2479
    %v2532 = vunpack.c.l.b16 %v2480
    %v2533 = vunpack.c.l.b16 %v2481
    %v2534 = vunpack.c.l.b16 %v2482
    %v2535 = vunpack.c.l.b16 %v2483
    %v2536 = vunpack.c.l.b16 %v2484
    %v2537 = vunpack.c.l.b16 %v2485
    %v2538 = vunpack.c.l.b16 %v2486
    %v2539 = vunpack.c.l.b16 %v2487
    %v2540 = vunpack.c.l.b16 %v2488
    %v2541 = vunpack.c.l.b16 %v2489
    %v2542 = vunpack.c.l.b16 %v2490
    %v2543 = vunpack.c.l.b16 %v2491
    %v2544 = vunpack.c.l.b16 %v2492
    %vm2545 = vcmask 1041409
    %v2546 = vsel %vm2545, %v2530, %v2529
    %vm2547 = vcmask 1042434
    %v2548 = vsel %vm2547, %v2531, %v2546
    %vm2549 = vcmask 1043459
    %v2550 = vsel %vm2549, %v2532, %v2548
    %vm2551 = vcmask 1044484
    %v2552 = vsel %vm2551, %v2533, %v2550
    %vm2553 = vcmask 1045509
    %v2554 = vsel %vm2553, %v2534, %v2552
    %vm2555 = vcmask 1046534
    %v2556 = vsel %vm2555, %v2535, %v2554
    %vm2557 = vcmask 1047559
    %v2558 = vsel %vm2557, %v2536, %v2556
    %v2559 = vsel %vm2545, %v2538, %v2537
    %v2560 = vsel %vm2547, %v2539, %v2559
    %v2561 = vsel %vm2549, %v2540, %v2560
    %v2562 = vsel %vm2551, %v2541, %v2561
    %v2563 = vsel %vm2553, %v2542, %v2562
    %v2564 = vsel %vm2555, %v2543, %v2563
    %v2565 = vsel %vm2557, %v2544, %v2564
    %v2566 = vpack.c.b16 %v2565, %v2558
    %v2584 = vunpack.c.l.b16 %v2493
    %v2585 = vunpack.c.l.b16 %v2494
    %v2586 = vunpack.c.l.b16 %v2495
    %v2587 = vunpack.c.l.b16 %v2496
    %v2588 = vunpack.c.l.b16 %v2497
    %v2589 = vunpack.c.l.b16 %v2498
    %v2590 = vunpack.c.l.b16 %v2499
    %v2591 = vunpack.c.l.b16 %v2500
    %v2592 = vunpack.c.l.b16 %v2501
    %v2593 = vunpack.c.l.b16 %v2502
    %v2594 = vunpack.c.l.b16 %v2503
    %v2595 = vunpack.c.l.b16 %v2504
    %v2596 = vunpack.c.l.b16 %v2505
    %v2597 = vunpack.c.l.b16 %v2506
    %v2598 = vunpack.c.l.b16 %v2507
    %v2599 = vunpack.c.l.b16 %v2508
    %v2600 = vpack.c.b16 %v2585, %v2584
    %v2601 = vpack.c.b16 %v2587, %v2586
    %v2602 = vpack.c.b16 %v2589, %v2588
    %v2603 = vpack.c.b16 %v2591, %v2590
    %v2604 = vpack.c.b16 %v2593, %v2592
    %v2605 = vpack.c.b16 %v2595, %v2594
    %v2606 = vpack.c.b16 %v2597, %v2596
    %v2607 = vpack.c.b16 %v2599, %v2598
    %2616 = vmatprep.subr.bf16.mxu0 0
    %2617 = vmatpush1.bf16.msra.mxu0 %v2600
    %2618 = vmatprep.subr.bf16.mxu0 0
    %2619 = vmatpush1.bf16.msra.mxu0 %v2601
    %2620 = vmatprep.subr.bf16.mxu0 0
    %2621 = vmatpush1.bf16.msra.mxu0 %v2602
    %2622 = vmatprep.subr.bf16.mxu0 0
    %2623 = vmatpush1.bf16.msra.mxu0 %v2603
    %2624 = vmatprep.subr.bf16.mxu0 0
    %2625 = vmatpush1.bf16.msra.mxu0 %v2604
    %2626 = vmatprep.subr.bf16.mxu0 0
    %2627 = vmatpush1.bf16.msra.mxu0 %v2605
    %2628 = vmatprep.subr.bf16.mxu0 0
    %2629 = vmatpush1.bf16.msra.mxu0 %v2606
    %2630 = vmatprep.subr.bf16.mxu0 0
    %2631 = vmatpush1.bf16.msra.mxu0 %v2607
    %2632 = vmatprep.subr.bf16.mxu0 0
    %2633 = vmatpush1.bf16.msra.mxu0 0
    %2634 = vmatprep.subr.bf16.mxu0 0
    %2635 = vmatpush1.bf16.msra.mxu0 0
    %2636 = vmatprep.subr.bf16.mxu0 0
    %2637 = vmatpush1.bf16.msra.mxu0 0
    %2638 = vmatprep.subr.bf16.mxu0 0
    %2639 = vmatpush1.bf16.msra.mxu0 0
    %2640 = vmatprep.subr.bf16.mxu0 0
    %2641 = vmatpush1.bf16.msra.mxu0 0
    %2642 = vmatprep.subr.bf16.mxu0 0
    %2643 = vmatpush1.bf16.msra.mxu0 0
    %2644 = vmatprep.subr.bf16.mxu0 0
    %2645 = vmatpush1.bf16.msra.mxu0 0
    %2646 = vmatprep.subr.bf16.mxu0 0
    %2647 = vmatpush1.bf16.msra.mxu0 0
    %2648 = vmatprep.mubr.bf16.mxu0 0
    %2649 = vmatmul.mubr.bf16.gmra.mrb[0].mxu0 %v2566
    %v2650 = vpop.f32.mrb[0].mxu0
    %v2651 = vadd.f32 %v2512, %v2650
    %v2652 = vpop.f32.mrb[0].mxu0
    %v2653 = vpop.f32.mrb[0].mxu0
    %v2654 = vadd.f32 %v2512, %v2653
    %v2655 = vpop.f32.mrb[0].mxu0
    %2656 = vdwg.mxu0
    %2657 = vst [vmem:[#allocation13] sm:$0xff] %v2651
    %2658 = vst [vmem:[#allocation13 + $0x8] sm:$0xff] %v2654
    // Predicated region
    $region54: #{_lambda_.1} parent=1 // pred_check
      _
    $region55: #{_lambda_.1} parent=1 // pred_check_branch
      %2660 = sbr.rel (0) target = $region57
    $region56: #{_lambda_.1} parent=1 // pred_region
      %s2662 = ssub.s32 256, 256
      %2663 = vsyncadd [#allocation4], %s2662
      %s2664 = sshll.u32 [#allocation13], 4
      %s2665 = int_to_ptr.vmem [resolvable:$true] %s2664
      %2670 = dma.vmem_to_hbm [thread:$0]  %s2665, 256, %s7, [#allocation4], 128, 128, 8
    $region57: #{_lambda_.1} parent=1 // pred_fallthru
      _
    // Predicated region
    $region58: #{_lambda_.1} parent=1 // pred_check
      _
    $region59: #{_lambda_.1} parent=1 // pred_check_branch
      %2672 = sbr.rel (0) target = $region61
    $region60: #{_lambda_.1} parent=1 // pred_region
      %2673 = dma.done [#allocation4], 256
    $region61: #{_lambda_.1} parent=1 // pred_fallthru
      _
    %2674 = vsyncpa [#allocation3], 1
    %2675 = vsyncpa [#allocation6], 1
    %2676 = vsyncpa [#allocation9], 1
    %2677 = vsyncpa [#allocation12], 1
    %2678 = vsyncpa [#allocation4], 1

</llo_original>
